<compile_context>
chip_gen: v6e
topology: v6e:2x2x1
jax: 0.10.0
libtpu: 0.0.40
codegen_flags: <defaults>
</compile_context>

<pallas_src>
import functools

import jax
import jax.numpy as jnp
import numpy as np
from jax.experimental import pallas as pl
from jax.experimental.pallas import tpu as pltpu


# ----------------------------------------------------------------------------
# Fused Pallas kernel  (one grid step == one batch element; grid is "parallel")
# ----------------------------------------------------------------------------
def _fused_stem_kernel(fixed_ref, moving_ref, bw1_ref, b1_ref, bw2_ref, b2_ref,
                       bw3_ref, b3_ref, wfc_ref, bfc_ref, g_ref,
                       flow_ref, theta_ref,
                       a0_ref, a1_ref, a2_ref, *, slope, sizes):
    s0, s1, s2, s3 = sizes
    cf = fixed_ref.shape[1]
    cm = moving_ref.shape[1]

    # ---- stage 0: in-kernel relayout [1,C,H,W] -> padded [H+2, C*W] rows ----
    # Lane order is (c, w) with w fastest, so fixed / moving land in contiguous
    # lane ranges -> plain copies, no interleave shuffles.
    zero0 = jnp.zeros((1, a0_ref.shape[1]), a0_ref.dtype)
    a0_ref[0:1, :] = zero0                      # top zero-pad row (height pad)
    a0_ref[s0 + 1:s0 + 2, :] = zero0            # bottom zero-pad row
    for c in range(cf):
        a0_ref[1:s0 + 1, c * s0:(c + 1) * s0] = \
            fixed_ref[0, c, :, :].astype(a0_ref.dtype)
    for c in range(cm):
        a0_ref[1:s0 + 1, (cf + c) * s0:(cf + c + 1) * s0] = \
            moving_ref[0, c, :, :].astype(a0_ref.dtype)

    def conv(src_ref, w_ref, b_ref, h_out):
        """3x3 / stride-2 / pad-1 conv layer as ONE MXU matmul.

        The 3 height taps are gathered with stride-2 sublane loads and
        concatenated along K, so the MXU accumulates over all taps internally.
        Width taps + channel mixing + width zero-padding are pre-folded into
        w_ref ([3*Win*Cin, Wout*Cout]) on the host.
        """
        lhs = jnp.concatenate(
            [src_ref[pl.ds(di, h_out, 2), :] for di in range(3)], axis=-1)
        if lhs.dtype != w_ref.dtype:            # single cast per layer (bf16 MXU)
            lhs = lhs.astype(w_ref.dtype)
        out = jnp.dot(lhs, w_ref[...], preferred_element_type=jnp.float32)
        out = out + b_ref[...]
        return jnp.where(out >= 0, out, slope * out)   # LeakyReLU, f32 epilogue

    # ---- encoder: conv1 -> conv2 -> conv3, intermediates never leave VMEM ----
    o1 = conv(a0_ref, bw1_ref, b1_ref, s1)               # [s1, c1*s1]
    z1 = jnp.zeros((1, a1_ref.shape[1]), a1_ref.dtype)
    a1_ref[0:1, :] = z1
    a1_ref[s1 + 1:s1 + 2, :] = z1
    a1_ref[1:s1 + 1, :] = o1.astype(a1_ref.dtype)

    o2 = conv(a1_ref, bw2_ref, b2_ref, s2)               # [s2, c2*s2]
    z2 = jnp.zeros((1, a2_ref.shape[1]), a2_ref.dtype)
    a2_ref[0:1, :] = z2
    a2_ref[s2 + 1:s2 + 2, :] = z2
    a2_ref[1:s2 + 1, :] = o2.astype(a2_ref.dtype)

    o3 = conv(a2_ref, bw3_ref, b3_ref, s3)               # [s3, c3*s3]

    # ---- global mean pool + FC (pool scale folded into wfc on the host) ----
    feat = jnp.sum(o3, axis=0, keepdims=True)            # [1, c3*s3]
    theta8 = jnp.dot(feat, wfc_ref[...],
                     preferred_element_type=jnp.float32) + bfc_ref[...]  # [1, 8]
    # theta8 = [a00, a01, tx, a10, a11, ty, 1, 0]  (lane 6 is a constant 1 that
    # applies the "- identity grid" row of the flow basis)

    # ---- dense affine flow for this batch element: lane-dense [1, 2*H*W] ----
    flow = jnp.dot(theta8, g_ref[...], preferred_element_type=jnp.float32)
    flow_ref[...] = flow.reshape(flow_ref.shape).astype(flow_ref.dtype)

    pad = theta_ref.shape[-1] - theta8.shape[-1]
    theta_out = jnp.concatenate(
        [theta8, jnp.zeros((1, pad), jnp.float32)], axis=-1)   # 128-lane slab
    theta_ref[...] = theta_out.reshape(theta_ref.shape).astype(theta_ref.dtype)


# ----------------------------------------------------------------------------
# Host-side constant folding helpers
# ----------------------------------------------------------------------------
def _fold_conv_weight(w, w_in, w_out):
    """[3, 3, Cin, Cout] kernel -> [3*Cin*W_in, Cout*W_out] matmul weight for a
    stride-2 / pad-1 conv along width; lane order is (c, w) with w fastest.
    The 3 height taps are stacked along K (outermost)."""
    kh, kw, cin, cout = w.shape
    wnp = np.asarray(w, np.float32)
    bw = np.zeros((kh, cin, w_in, cout, w_out), np.float32)
    for wo in range(w_out):
        for dj in range(kw):
            wi = 2 * wo + dj - 1
            if 0 <= wi < w_in:
                bw[:, :, wi, :, wo] += wnp[:, dj, :, :]
    return bw.reshape(kh * cin * w_in, cout * w_out)


def _flow_basis(H, W, fm):
    """[8, 2*H*W] basis G so that theta8 @ G is the flattened [flow_x | flow_y]
    field on the align_corners=True normalized grid, with the '- identity grid'
    offset folded into row 6 (theta8 lane 6 is a constant 1)."""
    hw = H * W
    xs = np.tile(2.0 * np.arange(W, dtype=np.float32) / max(W - 1, 1) - 1.0, H)
    ys = np.repeat(2.0 * np.arange(H, dtype=np.float32) / max(H - 1, 1) - 1.0, W)
    g = np.zeros((8, 2 * hw), np.float32)
    g[0, :hw] = fm * xs
    g[1, :hw] = fm * ys
    g[2, :hw] = fm
    g[3, hw:] = fm * xs
    g[4, hw:] = fm * ys
    g[5, hw:] = fm
    g[6, :hw] = -fm * xs          # identity offset (applied via theta lane 6)
    g[6, hw:] = -fm * ys
    return jnp.asarray(g)


# ----------------------------------------------------------------------------
# Module
# ----------------------------------------------------------------------------
class CLMAffineStemPallas:
    """JAX/Pallas re-implementation of CLMAffineStem.forward(fixed, moving)."""

    def __init__(self, dim=2, channels=16, flow_multiplier=1.0, im_size=16,
                 in_channels=2, seed=0, leaky_slope=0.2, use_bf16_mxu=True):
        assert dim == 2, "only the 2-D stem is implemented"
        self.im_size = int(im_size)
        self.in_channels = int(in_channels)
        self.flow_multiplier = float(flow_multiplier)
        self.leaky_slope = float(leaky_slope)

        s0 = self.im_size
        s1 = (s0 + 1) // 2
        s2 = (s1 + 1) // 2
        s3 = (s2 + 1) // 2
        c0, c1, c2, c3 = self.in_channels, channels, channels * 2, channels * 4
        self._sizes = (s0, s1, s2, s3)
        self._chans = (c0, c1, c2, c3)

        key = jax.random.PRNGKey(seed)
        k1, k2, k3, k4 = jax.random.split(key, 4)

        def conv_init(k, cin, cout):
            w = jax.random.normal(k, (3, 3, cin, cout), jnp.float32) \
                * np.sqrt(2.0 / (9 * cin))
            b = jnp.zeros((cout,), jnp.float32)
            return w, b

        w1, b1 = conv_init(k1, c0, c1)
        w2, b2 = conv_init(k2, c1, c2)
        w3, b3 = conv_init(k3, c2, c3)
        wfc = jax.random.normal(k4, (c3, 6), jnp.float32) * 0.01
        bfc = jnp.array([1.0, 0.0, 0.0, 0.0, 1.0, 0.0], jnp.float32)

        # raw parameters (kept for the pure-JAX reference path)
        self._w_raw = [w1, w2, w3]
        self._b_raw = [b1, b2, b3]
        self._wfc_raw = wfc
        self._bfc_raw = bfc

        mxu_dtype = jnp.bfloat16 if use_bf16_mxu else jnp.float32

        # Folded conv weights (height taps on K, width/channel mixing folded).
        self.bw1 = jnp.asarray(_fold_conv_weight(w1, s0, s1)).astype(mxu_dtype)
        self.bw2 = jnp.asarray(_fold_conv_weight(w2, s1, s2)).astype(mxu_dtype)
        self.bw3 = jnp.asarray(_fold_conv_weight(w3, s2, s3)).astype(mxu_dtype)
        # Biases tiled over lanes (c-major, w fastest), kept f32 for the epilogue.
        self.b1r = jnp.asarray(np.repeat(np.asarray(b1, np.float32), s1))[None, :]
        self.b2r = jnp.asarray(np.repeat(np.asarray(b2, np.float32), s2))[None, :]
        self.b3r = jnp.asarray(np.repeat(np.asarray(b3, np.float32), s3))[None, :]

        # Mean-pool folded into the FC weight (repeated over the width lanes,
        # scaled by 1/(s3*s3)); padded from 6 -> 8 outputs, columns 6/7 zero.
        pool = float(s3 * s3)
        wfc_np = np.asarray(wfc, np.float32) / pool                  # [c3, 6]
        wfc_big = np.repeat(wfc_np, s3, axis=0)                      # [c3*s3, 6]
        wfc_big = np.concatenate(
            [wfc_big, np.zeros((c3 * s3, 2), np.float32)], axis=1)   # [c3*s3, 8]
        self.wfc_big = jnp.asarray(wfc_big)
        self.bfc8 = jnp.asarray(
            np.concatenate([np.asarray(bfc, np.float32),
                            np.array([1.0, 0.0], np.float32)])[None, :])  # [1, 8]

        # Flow basis (grid, identity offset and flow_multiplier folded in).
        self.gmat = _flow_basis(s0, s0, self.flow_multiplier)

        self._kernel = functools.partial(_fused_stem_kernel,
                                         slope=self.leaky_slope,
                                         sizes=self._sizes)
        self._forward = jax.jit(self._forward_impl)

    # ------------------------------------------------------------------ Pallas
    def _forward_impl(self, fixed, moving):
        B = fixed.shape[0]
        H = W = self.im_size
        cf, cm = int(fixed.shape[1]), int(moving.shape[1])
        assert fixed.shape[2:] == (H, W) and moving.shape[2:] == (H, W)
        assert cf + cm == self.in_channels
        fixed = fixed.astype(jnp.float32)
        moving = moving.astype(jnp.float32)

        s0, s1, s2, s3 = self._sizes
        c0, c1, c2, c3 = self._chans

        flops = B * (2 * s1 * (3 * c0 * s0) * (c1 * s1)
                     + 2 * s2 * (3 * c1 * s1) * (c2 * s2)
                     + 2 * s3 * (3 * c2 * s2) * (c3 * s3)
                     + 2 * (c3 * s3) * 8
                     + 2 * 8 * (2 * H * W))
        weight_bytes = sum(int(a.size) * a.dtype.itemsize for a in
                           (self.bw1, self.bw2, self.bw3, self.b1r, self.b2r,
                            self.b3r, self.wfc_big, self.bfc8, self.gmat))
        bytes_accessed = (int(fixed.size) * 4 + int(moving.size) * 4
                          + weight_bytes + B * (2 * H * W + 128) * 4)

        def const2(arr):
            return pl.BlockSpec(arr.shape, lambda b: (0, 0))

        grid_spec = pltpu.PrefetchScalarGridSpec(
            num_scalar_prefetch=0,
            grid=(B,),
            in_specs=[
                pl.BlockSpec((1, cf, H, W), lambda b: (b, 0, 0, 0)),
                pl.BlockSpec((1, cm, H, W), lambda b: (b, 0, 0, 0)),
                const2(self.bw1), const2(self.b1r),
                const2(self.bw2), const2(self.b2r),
                const2(self.bw3), const2(self.b3r),
                const2(self.wfc_big), const2(self.bfc8),
                const2(self.gmat),
            ],
            out_specs=(
                pl.BlockSpec((1, 1, 2 * H * W), lambda b: (b, 0, 0)),
                pl.BlockSpec((1, 1, 128), lambda b: (b, 0, 0)),
            ),
            scratch_shapes=[
                pltpu.VMEM((s0 + 2, c0 * s0), jnp.float32),
                pltpu.VMEM((s1 + 2, c1 * s1), jnp.float32),
                pltpu.VMEM((s2 + 2, c2 * s2), jnp.float32),
            ],
        )

        flow_flat, theta_slab = pl.pallas_call(
            self._kernel,
            out_shape=(jax.ShapeDtypeStruct((B, 1, 2 * H * W), jnp.float32),
                       jax.ShapeDtypeStruct((B, 1, 128), jnp.float32)),
            grid_spec=grid_spec,
            compiler_params=pltpu.CompilerParams(
                dimension_semantics=("parallel",)),
            cost_estimate=pl.CostEstimate(flops=int(flops), transcendentals=0,
                                          bytes_accessed=int(bytes_accessed)),
        )(fixed, moving, self.bw1, self.b1r, self.bw2, self.b2r,
          self.bw3, self.b3r, self.wfc_big, self.bfc8, self.gmat)

        flow = flow_flat.reshape(B, 2, H, W)
        theta = theta_slab[:, 0, :6].reshape(B, 2, 3)
        return flow, theta

    def __call__(self, fixed, moving):
        flow, theta = self._forward(fixed, moving)
        return flow, {'theta': theta}

    # --------------------------------------------------------------- reference
    def reference_forward(self, fixed, moving):
        """Pure-JAX (XLA) reference with the same parameters."""
        x = jnp.concatenate([fixed, moving], axis=1).astype(jnp.float32)
        for w, b in zip(self._w_raw, self._b_raw):
            w_oihw = jnp.transpose(w, (3, 2, 0, 1))
            x = jax.lax.conv_general_dilated(
                x, w_oihw, window_strides=(2, 2), padding=((1, 1), (1, 1)),
                dimension_numbers=('NCHW', 'OIHW', 'NCHW'))
            x = x + b[None, :, None, None]
            x = jnp.where(x >= 0, x, self.leaky_slope * x)
        pooled = jnp.mean(x, axis=(2, 3))
        theta6 = pooled @ self._wfc_raw + self._bfc_raw[None, :]

        B = fixed.shape[0]
        H = W = self.im_size
        xs = jnp.asarray(
            np.tile(2.0 * np.arange(W, dtype=np.float32) / max(W - 1, 1) - 1.0,
                    H).reshape(H, W))
        ys = jnp.asarray(
            np.repeat(2.0 * np.arange(H, dtype=np.float32) / max(H - 1, 1) - 1.0,
                      W).reshape(H, W))
        a00 = theta6[:, 0][:, None, None]
        a01 = theta6[:, 1][:, None, None]
        tx = theta6[:, 2][:, None, None]
        a10 = theta6[:, 3][:, None, None]
        a11 = theta6[:, 4][:, None, None]
        ty = theta6[:, 5][:, None, None]
        fm = self.flow_multiplier
        fx = fm * ((a00 - 1.0) * xs[None] + a01 * ys[None] + tx)
        fy = fm * (a10 * xs[None] + (a11 - 1.0) * ys[None] + ty)
        flow = jnp.stack([fx, fy], axis=1)
        return flow, theta6.reshape(B, 2, 3)


# ----------------------------------------------------------------------------
if __name__ == "__main__":
    key = jax.random.PRNGKey(0)
    kf, km = jax.random.split(key)
    B, H, W = 2, 16, 16
    fixed = jax.random.normal(kf, (B, 1, H, W), jnp.float32)
    moving = jax.random.normal(km, (B, 1, H, W), jnp.float32)

    model = CLMAffineStemPallas(dim=2, channels=16, flow_multiplier=1.0,
                                im_size=H, in_channels=2, seed=0)
    flow, theta_dict = model(fixed, moving)
    jax.block_until_ready(flow)
    jax.block_until_ready(theta_dict['theta'])

    assert flow.shape == (B, 2, H, W), flow.shape
    assert theta_dict['theta'].shape == (B, 2, 3), theta_dict['theta'].shape

    # Correctness check against a pure-JAX/XLA reference (loose tol: bf16 MXU
    # weights in the kernel vs. default-precision f32 convs in the reference).
    flow_ref, theta_ref = model.reference_forward(fixed, moving)
    np.testing.assert_allclose(np.asarray(theta_dict['theta']),
                               np.asarray(theta_ref), rtol=2e-2, atol=2e-2)
    np.testing.assert_allclose(np.asarray(flow), np.asarray(flow_ref),
                               rtol=2e-2, atol=2e-2)
    print("KERNEL_OK")
</pallas_src>

<mosaic_0001>
module attributes {stable_mosaic.version = 11 : i64} {
  func.func @_fused_stem_kernel(%arg0: i32, %arg1: memref<1x1x16x16xf32, #tpu.memory_space<vmem>>, %arg2: memref<1x1x16x16xf32, #tpu.memory_space<vmem>>, %arg3: memref<96x128xbf16, #tpu.memory_space<vmem>>, %arg4: memref<1x128xf32, #tpu.memory_space<vmem>>, %arg5: memref<384x128xbf16, #tpu.memory_space<vmem>>, %arg6: memref<1x128xf32, #tpu.memory_space<vmem>>, %arg7: memref<384x128xbf16, #tpu.memory_space<vmem>>, %arg8: memref<1x128xf32, #tpu.memory_space<vmem>>, %arg9: memref<128x8xf32, #tpu.memory_space<vmem>>, %arg10: memref<1x8xf32, #tpu.memory_space<vmem>>, %arg11: memref<8x512xf32, #tpu.memory_space<vmem>>, %arg12: memref<1x1x512xf32, #tpu.memory_space<vmem>>, %arg13: memref<1x1x128xf32, #tpu.memory_space<vmem>>, %arg14: memref<18x32xf32, #tpu.memory_space<vmem>>, %arg15: memref<10x128xf32, #tpu.memory_space<vmem>>, %arg16: memref<6x128xf32, #tpu.memory_space<vmem>>) attributes {dimension_semantics = [#tpu.dimension_semantics<parallel>], iteration_bounds = array<i64: 2>, scalar_prefetch = 0 : i64, scratch_operands = 3 : i64, tpu.core_type = #tpu.core_type<tc>, window_params = [{transform_indices = @transform_0, window_bounds = array<i64: 1, 1, 16, 16>}, {transform_indices = @transform_1, window_bounds = array<i64: 1, 1, 16, 16>}, {pipeline_mode = #tpu.pipeline_mode<synchronous>, transform_indices = @transform_2, window_bounds = array<i64: 96, 128>}, {pipeline_mode = #tpu.pipeline_mode<synchronous>, transform_indices = @transform_3, window_bounds = array<i64: 1, 128>}, {pipeline_mode = #tpu.pipeline_mode<synchronous>, transform_indices = @transform_4, window_bounds = array<i64: 384, 128>}, {pipeline_mode = #tpu.pipeline_mode<synchronous>, transform_indices = @transform_5, window_bounds = array<i64: 1, 128>}, {pipeline_mode = #tpu.pipeline_mode<synchronous>, transform_indices = @transform_6, window_bounds = array<i64: 384, 128>}, {pipeline_mode = #tpu.pipeline_mode<synchronous>, transform_indices = @transform_7, window_bounds = array<i64: 1, 128>}, {pipeline_mode = #tpu.pipeline_mode<synchronous>, transform_indices = @transform_8, window_bounds = array<i64: 128, 8>}, {pipeline_mode = #tpu.pipeline_mode<synchronous>, transform_indices = @transform_9, window_bounds = array<i64: 1, 8>}, {pipeline_mode = #tpu.pipeline_mode<synchronous>, transform_indices = @transform_10, window_bounds = array<i64: 8, 512>}, {transform_indices = @transform_11, window_bounds = array<i64: 1, 1, 512>}, {transform_indices = @transform_12, window_bounds = array<i64: 1, 1, 128>}]} {
    %cst = arith.constant 0.000000e+00 : f32
    %0 = vector.broadcast %cst : f32 to vector<1x32xf32>
    %c0 = arith.constant 0 : index
    %c0_0 = arith.constant 0 : index
    %1 = vector.load %arg14[%c0, %c0_0] : memref<18x32xf32, #tpu.memory_space<vmem>>, vector<1x32xf32>
    tpu.vector_store %arg14[%c0, %c0_0], %0 {strides = array<i32>} : memref<18x32xf32, #tpu.memory_space<vmem>>, vector<1x32xf32>,
    %c17 = arith.constant 17 : index
    %c0_1 = arith.constant 0 : index
    %2 = vector.load %arg14[%c17, %c0_1] : memref<18x32xf32, #tpu.memory_space<vmem>>, vector<1x32xf32>
    tpu.vector_store %arg14[%c17, %c0_1], %0 {strides = array<i32>} : memref<18x32xf32, #tpu.memory_space<vmem>>, vector<1x32xf32>,
    %c0_2 = arith.constant 0 : index
    %c0_3 = arith.constant 0 : index
    %c0_4 = arith.constant 0 : index
    %c0_5 = arith.constant 0 : index
    %3 = vector.load %arg1[%c0_2, %c0_3, %c0_4, %c0_5] : memref<1x1x16x16xf32, #tpu.memory_space<vmem>>, vector<1x1x16x16xf32>
    %4 = vector.shape_cast %3 : vector<1x1x16x16xf32> to vector<16x16xf32>
    %c1 = arith.constant 1 : index
    %c0_6 = arith.constant 0 : index
    %5 = vector.load %arg14[%c1, %c0_6] : memref<18x32xf32, #tpu.memory_space<vmem>>, vector<16x16xf32>
    tpu.vector_store %arg14[%c1, %c0_6], %4 {strides = array<i32>} : memref<18x32xf32, #tpu.memory_space<vmem>>, vector<16x16xf32>,
    %c0_7 = arith.constant 0 : index
    %c0_8 = arith.constant 0 : index
    %c0_9 = arith.constant 0 : index
    %c0_10 = arith.constant 0 : index
    %6 = vector.load %arg2[%c0_7, %c0_8, %c0_9, %c0_10] : memref<1x1x16x16xf32, #tpu.memory_space<vmem>>, vector<1x1x16x16xf32>
    %7 = vector.shape_cast %6 : vector<1x1x16x16xf32> to vector<16x16xf32>
    %c1_11 = arith.constant 1 : index
    %c16 = arith.constant 16 : index
    %8 = vector.load %arg14[%c1_11, %c16] : memref<18x32xf32, #tpu.memory_space<vmem>>, vector<16x16xf32>
    tpu.vector_store %arg14[%c1_11, %c16], %7 {strides = array<i32>} : memref<18x32xf32, #tpu.memory_space<vmem>>, vector<16x16xf32>,
    %c0_12 = arith.constant 0 : index
    %c0_13 = arith.constant 0 : index
    %9 = tpu.strided_load %arg14[%c0_12, %c0_13] {strides = array<i32: 2, 1>} : memref<18x32xf32, #tpu.memory_space<vmem>>, vector<8x32xf32>
    %c1_14 = arith.constant 1 : index
    %c0_15 = arith.constant 0 : index
    %10 = tpu.strided_load %arg14[%c1_14, %c0_15] {strides = array<i32: 2, 1>} : memref<18x32xf32, #tpu.memory_space<vmem>>, vector<8x32xf32>
    %c2 = arith.constant 2 : index
    %c0_16 = arith.constant 0 : index
    %11 = tpu.strided_load %arg14[%c2, %c0_16] {strides = array<i32: 2, 1>} : memref<18x32xf32, #tpu.memory_space<vmem>>, vector<8x32xf32>
    %12 = tpu.concatenate %9, %10, %11 in 1 : vector<8x32xf32>, vector<8x32xf32>, vector<8x32xf32> -> vector<8x96xf32>
    %13 = arith.truncf %12 : vector<8x96xf32> to vector<8x96xbf16>
    %c0_17 = arith.constant 0 : index
    %c0_18 = arith.constant 0 : index
    %14 = vector.load %arg3[%c0_17, %c0_18] : memref<96x128xbf16, #tpu.memory_space<vmem>>, vector<96x128xbf16>
    %cst_19 = arith.constant dense<0.000000e+00> : vector<8x128xf32>
    %15 = tpu.matmul %13, %14, %cst_19 {dimension_numbers = #tpu.dot_dimension_numbers<[1], [0], [0], [1], [0, 0, 1, 1], [], []>} : vector<8x96xbf16>, vector<96x128xbf16>, vector<8x128xf32> -> vector<8x128xf32>
    %c0_20 = arith.constant 0 : index
    %c0_21 = arith.constant 0 : index
    %16 = vector.load %arg4[%c0_20, %c0_21] : memref<1x128xf32, #tpu.memory_space<vmem>>, vector<1x128xf32>
    %17 = vector.broadcast %16 : vector<1x128xf32> to vector<8x128xf32>
    %18 = arith.addf %15, %17 : vector<8x128xf32>
    %cst_22 = arith.constant 0.000000e+00 : f32
    %19 = vector.broadcast %cst_22 : f32 to vector<8x128xf32>
    %20 = arith.cmpf oge, %18, %19 : vector<8x128xf32>
    %cst_23 = arith.constant 2.000000e-01 : f32
    %21 = vector.broadcast %cst_23 : f32 to vector<8x128xf32>
    %22 = arith.mulf %21, %18 : vector<8x128xf32>
    %23 = arith.select %20, %18, %22 : vector<8x128xi1>, vector<8x128xf32>
    %cst_24 = arith.constant 0.000000e+00 : f32
    %24 = vector.broadcast %cst_24 : f32 to vector<1x128xf32>
    %c0_25 = arith.constant 0 : index
    %c0_26 = arith.constant 0 : index
    %25 = vector.load %arg15[%c0_25, %c0_26] : memref<10x128xf32, #tpu.memory_space<vmem>>, vector<1x128xf32>
    tpu.vector_store %arg15[%c0_25, %c0_26], %24 {strides = array<i32>} : memref<10x128xf32, #tpu.memory_space<vmem>>, vector<1x128xf32>,
    %c9 = arith.constant 9 : index
    %c0_27 = arith.constant 0 : index
    %26 = vector.load %arg15[%c9, %c0_27] : memref<10x128xf32, #tpu.memory_space<vmem>>, vector<1x128xf32>
    tpu.vector_store %arg15[%c9, %c0_27], %24 {strides = array<i32>} : memref<10x128xf32, #tpu.memory_space<vmem>>, vector<1x128xf32>,
    %c1_28 = arith.constant 1 : index
    %c0_29 = arith.constant 0 : index
    %27 = vector.load %arg15[%c1_28, %c0_29] : memref<10x128xf32, #tpu.memory_space<vmem>>, vector<8x128xf32>
    tpu.vector_store %arg15[%c1_28, %c0_29], %23 {strides = array<i32>} : memref<10x128xf32, #tpu.memory_space<vmem>>, vector<8x128xf32>,
    %c0_30 = arith.constant 0 : index
    %c0_31 = arith.constant 0 : index
    %28 = tpu.strided_load %arg15[%c0_30, %c0_31] {strides = array<i32: 2, 1>} : memref<10x128xf32, #tpu.memory_space<vmem>>, vector<4x128xf32>
    %c1_32 = arith.constant 1 : index
    %c0_33 = arith.constant 0 : index
    %29 = tpu.strided_load %arg15[%c1_32, %c0_33] {strides = array<i32: 2, 1>} : memref<10x128xf32, #tpu.memory_space<vmem>>, vector<4x128xf32>
    %c2_34 = arith.constant 2 : index
    %c0_35 = arith.constant 0 : index
    %30 = tpu.strided_load %arg15[%c2_34, %c0_35] {strides = array<i32: 2, 1>} : memref<10x128xf32, #tpu.memory_space<vmem>>, vector<4x128xf32>
    %31 = tpu.concatenate %28, %29, %30 in 1 : vector<4x128xf32>, vector<4x128xf32>, vector<4x128xf32> -> vector<4x384xf32>
    %32 = arith.truncf %31 : vector<4x384xf32> to vector<4x384xbf16>
    %c0_36 = arith.constant 0 : index
    %c0_37 = arith.constant 0 : index
    %33 = vector.load %arg5[%c0_36, %c0_37] : memref<384x128xbf16, #tpu.memory_space<vmem>>, vector<384x128xbf16>
    %cst_38 = arith.constant dense<0.000000e+00> : vector<4x128xf32>
    %34 = tpu.matmul %32, %33, %cst_38 {dimension_numbers = #tpu.dot_dimension_numbers<[1], [0], [0], [1], [0, 0, 1, 1], [], []>} : vector<4x384xbf16>, vector<384x128xbf16>, vector<4x128xf32> -> vector<4x128xf32>
    %c0_39 = arith.constant 0 : index
    %c0_40 = arith.constant 0 : index
    %35 = vector.load %arg6[%c0_39, %c0_40] : memref<1x128xf32, #tpu.memory_space<vmem>>, vector<1x128xf32>
    %36 = vector.broadcast %35 : vector<1x128xf32> to vector<4x128xf32>
    %37 = arith.addf %34, %36 : vector<4x128xf32>
    %cst_41 = arith.constant 0.000000e+00 : f32
    %38 = vector.broadcast %cst_41 : f32 to vector<4x128xf32>
    %39 = arith.cmpf oge, %37, %38 : vector<4x128xf32>
    %cst_42 = arith.constant 2.000000e-01 : f32
    %40 = vector.broadcast %cst_42 : f32 to vector<4x128xf32>
    %41 = arith.mulf %40, %37 : vector<4x128xf32>
    %42 = arith.select %39, %37, %41 : vector<4x128xi1>, vector<4x128xf32>
    %cst_43 = arith.constant 0.000000e+00 : f32
    %43 = vector.broadcast %cst_43 : f32 to vector<1x128xf32>
    %c0_44 = arith.constant 0 : index
    %c0_45 = arith.constant 0 : index
    %44 = vector.load %arg16[%c0_44, %c0_45] : memref<6x128xf32, #tpu.memory_space<vmem>>, vector<1x128xf32>
    tpu.vector_store %arg16[%c0_44, %c0_45], %43 {strides = array<i32>} : memref<6x128xf32, #tpu.memory_space<vmem>>, vector<1x128xf32>,
    %c5 = arith.constant 5 : index
    %c0_46 = arith.constant 0 : index
    %45 = vector.load %arg16[%c5, %c0_46] : memref<6x128xf32, #tpu.memory_space<vmem>>, vector<1x128xf32>
    tpu.vector_store %arg16[%c5, %c0_46], %43 {strides = array<i32>} : memref<6x128xf32, #tpu.memory_space<vmem>>, vector<1x128xf32>,
    %c1_47 = arith.constant 1 : index
    %c0_48 = arith.constant 0 : index
    %46 = vector.load %arg16[%c1_47, %c0_48] : memref<6x128xf32, #tpu.memory_space<vmem>>, vector<4x128xf32>
    tpu.vector_store %arg16[%c1_47, %c0_48], %42 {strides = array<i32>} : memref<6x128xf32, #tpu.memory_space<vmem>>, vector<4x128xf32>,
    %c0_49 = arith.constant 0 : index
    %c0_50 = arith.constant 0 : index
    %47 = tpu.strided_load %arg16[%c0_49, %c0_50] {strides = array<i32: 2, 1>} : memref<6x128xf32, #tpu.memory_space<vmem>>, vector<2x128xf32>
    %c1_51 = arith.constant 1 : index
    %c0_52 = arith.constant 0 : index
    %48 = tpu.strided_load %arg16[%c1_51, %c0_52] {strides = array<i32: 2, 1>} : memref<6x128xf32, #tpu.memory_space<vmem>>, vector<2x128xf32>
    %c2_53 = arith.constant 2 : index
    %c0_54 = arith.constant 0 : index
    %49 = tpu.strided_load %arg16[%c2_53, %c0_54] {strides = array<i32: 2, 1>} : memref<6x128xf32, #tpu.memory_space<vmem>>, vector<2x128xf32>
    %50 = tpu.concatenate %47, %48, %49 in 1 : vector<2x128xf32>, vector<2x128xf32>, vector<2x128xf32> -> vector<2x384xf32>
    %51 = arith.truncf %50 : vector<2x384xf32> to vector<2x384xbf16>
    %c0_55 = arith.constant 0 : index
    %c0_56 = arith.constant 0 : index
    %52 = vector.load %arg7[%c0_55, %c0_56] : memref<384x128xbf16, #tpu.memory_space<vmem>>, vector<384x128xbf16>
    %cst_57 = arith.constant dense<0.000000e+00> : vector<2x128xf32>
    %53 = tpu.matmul %51, %52, %cst_57 {dimension_numbers = #tpu.dot_dimension_numbers<[1], [0], [0], [1], [0, 0, 1, 1], [], []>} : vector<2x384xbf16>, vector<384x128xbf16>, vector<2x128xf32> -> vector<2x128xf32>
    %c0_58 = arith.constant 0 : index
    %c0_59 = arith.constant 0 : index
    %54 = vector.load %arg8[%c0_58, %c0_59] : memref<1x128xf32, #tpu.memory_space<vmem>>, vector<1x128xf32>
    %55 = vector.broadcast %54 : vector<1x128xf32> to vector<2x128xf32>
    %56 = arith.addf %53, %55 : vector<2x128xf32>
    %cst_60 = arith.constant 0.000000e+00 : f32
    %57 = vector.broadcast %cst_60 : f32 to vector<2x128xf32>
    %58 = arith.cmpf oge, %56, %57 : vector<2x128xf32>
    %cst_61 = arith.constant 2.000000e-01 : f32
    %59 = vector.broadcast %cst_61 : f32 to vector<2x128xf32>
    %60 = arith.mulf %59, %56 : vector<2x128xf32>
    %61 = arith.select %58, %56, %60 : vector<2x128xi1>, vector<2x128xf32>
    %cst_62 = arith.constant dense<0.000000e+00> : vector<128xf32>
    %62 = vector.multi_reduction <add>, %61, %cst_62 [0] : vector<2x128xf32> to vector<128xf32>
    %63 = vector.shape_cast %62 : vector<128xf32> to vector<1x128xf32>
    %c0_63 = arith.constant 0 : index
    %c0_64 = arith.constant 0 : index
    %64 = vector.load %arg9[%c0_63, %c0_64] : memref<128x8xf32, #tpu.memory_space<vmem>>, vector<128x8xf32>
    %cst_65 = arith.constant dense<0.000000e+00> : vector<1x8xf32>
    %65 = tpu.matmul %63, %64, %cst_65 {dimension_numbers = #tpu.dot_dimension_numbers<[1], [0], [0], [1], [0, 0, 1, 1], [], []>} : vector<1x128xf32>, vector<128x8xf32>, vector<1x8xf32> -> vector<1x8xf32>
    %c0_66 = arith.constant 0 : index
    %c0_67 = arith.constant 0 : index
    %66 = vector.load %arg10[%c0_66, %c0_67] : memref<1x8xf32, #tpu.memory_space<vmem>>, vector<1x8xf32>
    %67 = arith.addf %65, %66 : vector<1x8xf32>
    %c0_68 = arith.constant 0 : index
    %c0_69 = arith.constant 0 : index
    %68 = vector.load %arg11[%c0_68, %c0_69] : memref<8x512xf32, #tpu.memory_space<vmem>>, vector<8x512xf32>
    %cst_70 = arith.constant dense<0.000000e+00> : vector<1x512xf32>
    %69 = tpu.matmul %67, %68, %cst_70 {dimension_numbers = #tpu.dot_dimension_numbers<[1], [0], [0], [1], [0, 0, 1, 1], [], []>} : vector<1x8xf32>, vector<8x512xf32>, vector<1x512xf32> -> vector<1x512xf32>
    %70 = vector.shape_cast %69 : vector<1x512xf32> to vector<1x1x512xf32>
    %c0_71 = arith.constant 0 : index
    %c0_72 = arith.constant 0 : index
    %c0_73 = arith.constant 0 : index
    %71 = vector.load %arg12[%c0_71, %c0_72, %c0_73] : memref<1x1x512xf32, #tpu.memory_space<vmem>>, vector<1x1x512xf32>
    tpu.vector_store %arg12[%c0_71, %c0_72, %c0_73], %70 {strides = array<i32>} : memref<1x1x512xf32, #tpu.memory_space<vmem>>, vector<1x1x512xf32>,
    %cst_74 = arith.constant 0.000000e+00 : f32
    %72 = vector.broadcast %cst_74 : f32 to vector<1x120xf32>
    %73 = tpu.concatenate %67, %72 in 1 : vector<1x8xf32>, vector<1x120xf32> -> vector<1x128xf32>
    %74 = vector.shape_cast %73 : vector<1x128xf32> to vector<1x1x128xf32>
    %c0_75 = arith.constant 0 : index
    %c0_76 = arith.constant 0 : index
    %c0_77 = arith.constant 0 : index
    %75 = vector.load %arg13[%c0_75, %c0_76, %c0_77] : memref<1x1x128xf32, #tpu.memory_space<vmem>>, vector<1x1x128xf32>
    tpu.vector_store %arg13[%c0_75, %c0_76, %c0_77], %74 {strides = array<i32>} : memref<1x1x128xf32, #tpu.memory_space<vmem>>, vector<1x1x128xf32>,
    return
  }
  func.func @transform_0(%arg0: i32) -> (i32, i32, i32, i32) {
    %c0_i32 = arith.constant 0 : i32
    %c0_i32_0 = arith.constant 0 : i32
    %c0_i32_1 = arith.constant 0 : i32
    %c0_i32_2 = arith.constant 0 : i32
    return %arg0, %c0_i32, %c0_i32_0, %c0_i32_1 : i32, i32, i32, i32
  }
  func.func @transform_1(%arg0: i32) -> (i32, i32, i32, i32) {
    %c0_i32 = arith.constant 0 : i32
    %c0_i32_0 = arith.constant 0 : i32
    %c0_i32_1 = arith.constant 0 : i32
    %c0_i32_2 = arith.constant 0 : i32
    return %arg0, %c0_i32, %c0_i32_0, %c0_i32_1 : i32, i32, i32, i32
  }
  func.func @transform_2(%arg0: i32) -> (i32, i32) {
    %c0_i32 = arith.constant 0 : i32
    %c0_i32_0 = arith.constant 0 : i32
    %c0_i32_1 = arith.constant 0 : i32
    return %c0_i32, %c0_i32_0 : i32, i32
  }
  func.func @transform_3(%arg0: i32) -> (i32, i32) {
    %c0_i32 = arith.constant 0 : i32
    %c0_i32_0 = arith.constant 0 : i32
    %c0_i32_1 = arith.constant 0 : i32
    return %c0_i32, %c0_i32_0 : i32, i32
  }
  func.func @transform_4(%arg0: i32) -> (i32, i32) {
    %c0_i32 = arith.constant 0 : i32
    %c0_i32_0 = arith.constant 0 : i32
    %c0_i32_1 = arith.constant 0 : i32
    return %c0_i32, %c0_i32_0 : i32, i32
  }
  func.func @transform_5(%arg0: i32) -> (i32, i32) {
    %c0_i32 = arith.constant 0 : i32
    %c0_i32_0 = arith.constant 0 : i32
    %c0_i32_1 = arith.constant 0 : i32
    return %c0_i32, %c0_i32_0 : i32, i32
  }
  func.func @transform_6(%arg0: i32) -> (i32, i32) {
    %c0_i32 = arith.constant 0 : i32
    %c0_i32_0 = arith.constant 0 : i32
    %c0_i32_1 = arith.constant 0 : i32
    return %c0_i32, %c0_i32_0 : i32, i32
  }
  func.func @transform_7(%arg0: i32) -> (i32, i32) {
    %c0_i32 = arith.constant 0 : i32
    %c0_i32_0 = arith.constant 0 : i32
    %c0_i32_1 = arith.constant 0 : i32
    return %c0_i32, %c0_i32_0 : i32, i32
  }
  func.func @transform_8(%arg0: i32) -> (i32, i32) {
    %c0_i32 = arith.constant 0 : i32
    %c0_i32_0 = arith.constant 0 : i32
    %c0_i32_1 = arith.constant 0 : i32
    return %c0_i32, %c0_i32_0 : i32, i32
  }
  func.func @transform_9(%arg0: i32) -> (i32, i32) {
    %c0_i32 = arith.constant 0 : i32
    %c0_i32_0 = arith.constant 0 : i32
    %c0_i32_1 = arith.constant 0 : i32
    return %c0_i32, %c0_i32_0 : i32, i32
  }
  func.func @transform_10(%arg0: i32) -> (i32, i32) {
    %c0_i32 = arith.constant 0 : i32
    %c0_i32_0 = arith.constant 0 : i32
    %c0_i32_1 = arith.constant 0 : i32
    return %c0_i32, %c0_i32_0 : i32, i32
  }
  func.func @transform_11(%arg0: i32) -> (i32, i32, i32) {
    %c0_i32 = arith.constant 0 : i32
    %c0_i32_0 = arith.constant 0 : i32
    %c0_i32_1 = arith.constant 0 : i32
    return %arg0, %c0_i32, %c0_i32_0 : i32, i32, i32
  }
  func.func @transform_12(%arg0: i32) -> (i32, i32, i32) {
    %c0_i32 = arith.constant 0 : i32
    %c0_i32_0 = arith.constant 0 : i32
    %c0_i32_1 = arith.constant 0 : i32
    return %arg0, %c0_i32, %c0_i32_0 : i32, i32, i32
  }
}

</mosaic_0001>

<llo_original>
// kernel: squeeze.1
$region0: #{squeeze.1}
  %s0 = inlined_call_operand.vmem [shape: f32[2,6], index: 0, kind: input, shape index: {}]
  %s1 = inlined_call_operand.hbm [shape: f32[2,2,3], index: 1, kind: output, shape index: {}]
  $region1: #{squeeze.1} parent=0
    #allocation0 [shape = 'u8[2048]{0}', space=vmem, size = 0x800, scoped, tag = 'operand span for operand 1']
    #allocation1 [shape = 's32[1]{0}', space=sflag, size = 0x4, scoped, tag = 'scoped memory for squeeze.1']
    #allocation2 [shape = 'u8[8192]{0}', space=vmem, size = 0x2000, scoped, tag = 'scoped mem for output reshape']
    #allocation3 [shape = 'u8[4096]{0}', space=vmem, size = 0x1000, scoped, tag = 'scoped mem for input reshape']
    %2 = vsyncpa [#allocation1], 0
    %s4 = sshll.u32 1, 2
    %s5 = ssub.s32 %s4, 1
    %v6 = vld [vmem:[%s0] sm:%s5]
    %7 = vst [vmem:[#allocation3] sm:%s5] %v6
    %v8 = vld [vmem:[#allocation3] sm:$0x3]
    %vm9 = vcmask 23552
    %10 = vst.msk [vmem:[#allocation2] ss:$8 sm:$0x3] %vm9, %v8
    %v11 = vld [vmem:[#allocation3] sm:$0x3]
    %12 = vrot.lane.b32.xlu0 %v11, 125
    %v13 = vpop.permute.xlu0 %12
    %vm14 = vcmask 23552
    %s15 = scalar_lea.vmem [#allocation2], 1
    %16 = vst.msk [vmem:[%s15] ss:$8 sm:$0x3] %vm14, %v13
    %s18 = sshll.u32 1, 2
    %s19 = ssub.s32 %s18, 1
    %v21 = vld [vmem:[#allocation2] sm:%s19]
    %s22 = sshll.u32 1, 2
    %s23 = ssub.s32 %s22, 1
    %24 = vst [vmem:[#allocation0] sm:%s23] %v21
    %s25 = scalar_lea.vmem [#allocation2], 8
    %v26 = vld [vmem:[%s25] sm:%s19]
    %s27 = sshll.u32 1, 2
    %s28 = ssub.s32 %s27, 1
    %s29 = scalar_lea.vmem [#allocation0], 2
    %30 = vst [vmem:[%s29] sm:%s28] %v26
    %s32 = ssub.s32 64, 64
    %33 = vsyncadd [#allocation1], %s32
    %s35 = sshll.u32 [#allocation0], 4
    %s36 = int_to_ptr.vmem [resolvable:$true] %s35
    %38 = dma.vmem_to_hbm [thread:$0]  %s36, 64, %s1, [#allocation1]
    %39 = dma.done [#allocation1], 64
    %40 = vsyncpa [#allocation1], 1

// kernel: _forward_impl.1
$region0: #{_forward_impl.1}
  #allocation0 [shape = 'u32[]', space=smem, size = 0x4, offset = 0x4, fixed_abs, tag = 'smem constant byte address 0x4 - core index']
  #allocation1 [shape = 'u32[144,128]{1,0:T(1,128)}', space=vmem, size = 0x12000, scoped, tag = 'internal scratch']
  #allocation2 [shape = 'f32[18,32]{1,0:T(8,128)}', space=vmem, size = 0x3000, scoped, tag = 'scratch operand']
  #allocation3 [shape = 'f32[10,128]{1,0:T(8,128)}', space=vmem, size = 0x2000, scoped, tag = 'scratch operand']
  #allocation4 [shape = 'f32[6,128]{1,0:T(8,128)}', space=vmem, size = 0x1000, scoped, tag = 'scratch operand']
  %s0 = inlined_call_operand.hbm [shape: f32[2,1,16,16], index: 0, kind: input, shape index: {}]
  %s1 = inlined_call_operand.hbm [shape: f32[2,1,16,16], index: 1, kind: input, shape index: {}]
  %s2 = inlined_call_operand.hbm [shape: bf16[96,128], index: 2, kind: input, shape index: {}]
  %s3 = inlined_call_operand.vmem [shape: f32[1,128], index: 3, kind: input, shape index: {}, may-alias: {3,5,7}]
  %s4 = inlined_call_operand.hbm [shape: bf16[384,128], index: 4, kind: input, shape index: {}]
  %s5 = inlined_call_operand.vmem [shape: f32[1,128], index: 5, kind: input, shape index: {}, may-alias: {3,5,7}]
  %s6 = inlined_call_operand.hbm [shape: bf16[384,128], index: 6, kind: input, shape index: {}]
  %s7 = inlined_call_operand.vmem [shape: f32[1,128], index: 7, kind: input, shape index: {}, may-alias: {3,5,7}]
  %s8 = inlined_call_operand.hbm [shape: f32[128,8], index: 8, kind: input, shape index: {}]
  %s9 = inlined_call_operand.vmem [shape: f32[1,8], index: 9, kind: input, shape index: {}]
  %s10 = inlined_call_operand.hbm [shape: f32[8,512], index: 10, kind: input, shape index: {}]
  %s11 = inlined_call_operand.vmem [shape: f32[2,1,512], index: 11, kind: output, shape index: {0}]
  %s12 = inlined_call_operand.vmem [shape: f32[2,1,128], index: 12, kind: output, shape index: {1}]
  %13 = xla_tuple %s11, %s12
  %s14 = sld [smem:[#allocation0]]
  $region113: #{_forward_impl.1} parent=0
    _
  %s16 = ssub.s32 1, %s14
  %s17 = scalar_select 0, %s16, %s14
  $region1: #{_forward_impl.1} parent=0
    #allocation5 [shape = 'u8[16384]{0}', space=vmem, size = 0x4000, scoped, tag = 'input window, operand 0']
    #allocation6 [shape = 's32[2]{0}', space=sflag, size = 0x8, scoped, tag = 'scoped memory for _forward_impl.1']
    #allocation7 [shape = 'u8[16384]{0}', space=vmem, size = 0x4000, scoped, tag = 'input window, operand 1']
    #allocation8 [shape = 's32[2]{0}', space=sflag, size = 0x8, scoped, tag = 'scoped memory for _forward_impl.1']
    #allocation9 [shape = 'u8[24576]{0}', space=vmem, size = 0x6000, scoped, tag = 'input window, operand 2, single buffered']
    #allocation10 [shape = 'u8[98304]{0}', space=vmem, size = 0x18000, scoped, tag = 'input window, operand 4, single buffered']
    #allocation11 [shape = 's32[1]{0}', space=sflag, size = 0x4, scoped, tag = 'scoped memory for _forward_impl.1']
    #allocation12 [shape = 'u8[98304]{0}', space=vmem, size = 0x18000, scoped, tag = 'input window, operand 6, single buffered']
    #allocation13 [shape = 'u8[65536]{0}', space=vmem, size = 0x10000, scoped, tag = 'input window, operand 8, single buffered']
    #allocation14 [shape = 's32[1]{0}', space=sflag, size = 0x4, scoped, tag = 'scoped memory for _forward_impl.1']
    #allocation15 [shape = 'u8[16384]{0}', space=vmem, size = 0x4000, scoped, tag = 'input window, operand 10, single buffered']
    %18 = vsyncpa [#allocation6], 0
    %s19 = scalar_lea.sflag [#allocation6], 1
    %20 = vsyncpa %s19, 0
    %21 = vsyncpa [#allocation8], 0
    %s22 = scalar_lea.sflag [#allocation8], 1
    %23 = vsyncpa %s22, 0
    %24 = vsyncpa [#allocation11], 0
    %25 = vsyncpa [#allocation14], 0
    loop: start=0, step=1, limit=4
    $region2: #{_forward_impl.1} parent=1 // loop_pre_header
      _
    $region3: #{_forward_impl.1} parent=1 // loop_header
      %s27 = sphi 0, %s31
      %p28 = scmp.ge.s32.totalorder %s27, 4
      %s37 = sphi 0, %s39
      %s40 = sphi 0, %s37
      %s41 = sphi 0, %s40
      %s57 = sphi 0, %s41
      %s63 = sphi 0, %s65
      %s66 = sphi 0, %s63
      %s67 = sphi 0, %s66
      %s83 = sphi 0, %s67
      %s87 = sphi 0, %s87
      %s89 = sphi 0, %s87
      %s90 = sphi 0, %s89
      %s104 = sphi 0, %s90
      %s108 = sphi 0, %s108
      %s110 = sphi 0, %s108
      %s111 = sphi 0, %s110
      %s125 = sphi 0, %s111
      %s129 = sphi 0, %s129
      %s131 = sphi 0, %s129
      %s132 = sphi 0, %s131
      %s146 = sphi 0, %s132
      %s150 = sphi 0, %s150
      %s152 = sphi 0, %s150
      %s153 = sphi 0, %s152
      %s167 = sphi 0, %s153
      %s171 = sphi 0, %s171
      %s173 = sphi 0, %s171
      %s174 = sphi 0, %s173
      %s188 = sphi 0, %s174
      %s192 = sphi 0, %s192
      %s194 = sphi 0, %s192
      %s195 = sphi 0, %s194
      %s209 = sphi 0, %s195
      %s213 = sphi 0, %s213
      %s215 = sphi 0, %s213
      %s216 = sphi 0, %s215
      %s230 = sphi 0, %s216
      %s234 = sphi 0, %s234
      %s236 = sphi 0, %s234
      %s237 = sphi 0, %s236
      %s251 = sphi 0, %s237
      %s255 = sphi 0, %s255
      %s257 = sphi 0, %s255
      %s258 = sphi 0, %s257
      %s272 = sphi 0, %s258
      %s278 = sphi 0, %s280
      %s281 = sphi 0, %s278
      %s282 = sphi 0, %s281
      %s298 = sphi 0, %s282
      %s304 = sphi 0, %s306
      %s307 = sphi 0, %s304
      %s308 = sphi 0, %s307
      %s324 = sphi 0, %s308
    $region4: #{_forward_impl.1} parent=1 // loop_header_branch
      %30 = sbr.rel (%p28) target = $region8
    $region5: #{_forward_impl.1} parent=1 // loop_body
      %s32 = ssub.s32 %s27, 1
      %s33 = ssub.s32 %s27, 2
      %s34 = sadd.s32 %s27, 1
      %s35 = ssub.s32 %s27, %s34
      %p36 = scmp.eq.s32.totalorder %s35, 0
      %s38 = sadd.s32 %s37, 1
      %s39 = scalar_select %p36, %s37, %s38
      %p42 = pneg %p36
      %p43 = scmp.eq.s32.totalorder %s27, 1
      %p44 = por %p42, %p43
      %p45 = scmp.ne.s32.totalorder %s37, %s40
      %p46 = scmp.eq.s32.totalorder %s27, 0
      %p47 = por %p45, %p46
      %p48 = scmp.ne.s32.totalorder %s37, %s40
      %p49 = scmp.eq.s32.totalorder %s32, 1
      %p50 = por %p48, %p49
      %p51 = scmp.ne.s32.totalorder %s40, %s41
      %p52 = scmp.eq.s32.totalorder %s32, 0
      %p53 = por %p51, %p52
      %p54 = scmp.ne.s32.totalorder %s40, %s41
      %p55 = scmp.eq.s32.totalorder %s33, 1
      %p56 = por %p54, %p55
      %p58 = scmp.ne.s32.totalorder %s41, %s57
      %p59 = scmp.eq.s32.totalorder %s33, 0
      %p60 = por %p58, %p59
      %s61 = ssub.s32 %s27, %s34
      %p62 = scmp.eq.s32.totalorder %s61, 0
      %s64 = sadd.s32 %s63, 1
      %s65 = scalar_select %p62, %s63, %s64
      %p68 = pneg %p62
      %p69 = scmp.eq.s32.totalorder %s27, 1
      %p70 = por %p68, %p69
      %p71 = scmp.ne.s32.totalorder %s63, %s66
      %p72 = scmp.eq.s32.totalorder %s27, 0
      %p73 = por %p71, %p72
      %p74 = scmp.ne.s32.totalorder %s63, %s66
      %p75 = scmp.eq.s32.totalorder %s32, 1
      %p76 = por %p74, %p75
      %p77 = scmp.ne.s32.totalorder %s66, %s67
      %p78 = scmp.eq.s32.totalorder %s32, 0
      %p79 = por %p77, %p78
      %p80 = scmp.ne.s32.totalorder %s66, %s67
      %p81 = scmp.eq.s32.totalorder %s33, 1
      %p82 = por %p80, %p81
      %p84 = scmp.ne.s32.totalorder %s67, %s83
      %p85 = scmp.eq.s32.totalorder %s33, 0
      %p86 = por %p84, %p85
      %s88 = sadd.s32 %s87, 1
      %p91 = scmp.eq.s32.totalorder %s27, 1
      %p92 = scmp.ne.s32.totalorder %s87, %s89
      %p93 = scmp.eq.s32.totalorder %s27, 0
      %p94 = por %p92, %p93
      %p95 = scmp.ne.s32.totalorder %s87, %s89
      %p96 = scmp.eq.s32.totalorder %s32, 1
      %p97 = por %p95, %p96
      %p98 = scmp.ne.s32.totalorder %s89, %s90
      %p99 = scmp.eq.s32.totalorder %s32, 0
      %p100 = por %p98, %p99
      %p101 = scmp.ne.s32.totalorder %s89, %s90
      %p102 = scmp.eq.s32.totalorder %s33, 1
      %p103 = por %p101, %p102
      %p105 = scmp.ne.s32.totalorder %s90, %s104
      %p106 = scmp.eq.s32.totalorder %s33, 0
      %p107 = por %p105, %p106
      %s109 = sadd.s32 %s108, 1
      %p112 = scmp.eq.s32.totalorder %s27, 1
      %p113 = scmp.ne.s32.totalorder %s108, %s110
      %p114 = scmp.eq.s32.totalorder %s27, 0
      %p115 = por %p113, %p114
      %p116 = scmp.ne.s32.totalorder %s108, %s110
      %p117 = scmp.eq.s32.totalorder %s32, 1
      %p118 = por %p116, %p117
      %p119 = scmp.ne.s32.totalorder %s110, %s111
      %p120 = scmp.eq.s32.totalorder %s32, 0
      %p121 = por %p119, %p120
      %p122 = scmp.ne.s32.totalorder %s110, %s111
      %p123 = scmp.eq.s32.totalorder %s33, 1
      %p124 = por %p122, %p123
      %p126 = scmp.ne.s32.totalorder %s111, %s125
      %p127 = scmp.eq.s32.totalorder %s33, 0
      %p128 = por %p126, %p127
      %s130 = sadd.s32 %s129, 1
      %p133 = scmp.eq.s32.totalorder %s27, 1
      %p134 = scmp.ne.s32.totalorder %s129, %s131
      %p135 = scmp.eq.s32.totalorder %s27, 0
      %p136 = por %p134, %p135
      %p137 = scmp.ne.s32.totalorder %s129, %s131
      %p138 = scmp.eq.s32.totalorder %s32, 1
      %p139 = por %p137, %p138
      %p140 = scmp.ne.s32.totalorder %s131, %s132
      %p141 = scmp.eq.s32.totalorder %s32, 0
      %p142 = por %p140, %p141
      %p143 = scmp.ne.s32.totalorder %s131, %s132
      %p144 = scmp.eq.s32.totalorder %s33, 1
      %p145 = por %p143, %p144
      %p147 = scmp.ne.s32.totalorder %s132, %s146
      %p148 = scmp.eq.s32.totalorder %s33, 0
      %p149 = por %p147, %p148
      %s151 = sadd.s32 %s150, 1
      %p154 = scmp.eq.s32.totalorder %s27, 1
      %p155 = scmp.ne.s32.totalorder %s150, %s152
      %p156 = scmp.eq.s32.totalorder %s27, 0
      %p157 = por %p155, %p156
      %p158 = scmp.ne.s32.totalorder %s150, %s152
      %p159 = scmp.eq.s32.totalorder %s32, 1
      %p160 = por %p158, %p159
      %p161 = scmp.ne.s32.totalorder %s152, %s153
      %p162 = scmp.eq.s32.totalorder %s32, 0
      %p163 = por %p161, %p162
      %p164 = scmp.ne.s32.totalorder %s152, %s153
      %p165 = scmp.eq.s32.totalorder %s33, 1
      %p166 = por %p164, %p165
      %p168 = scmp.ne.s32.totalorder %s153, %s167
      %p169 = scmp.eq.s32.totalorder %s33, 0
      %p170 = por %p168, %p169
      %s172 = sadd.s32 %s171, 1
      %p175 = scmp.eq.s32.totalorder %s27, 1
      %p176 = scmp.ne.s32.totalorder %s171, %s173
      %p177 = scmp.eq.s32.totalorder %s27, 0
      %p178 = por %p176, %p177
      %p179 = scmp.ne.s32.totalorder %s171, %s173
      %p180 = scmp.eq.s32.totalorder %s32, 1
      %p181 = por %p179, %p180
      %p182 = scmp.ne.s32.totalorder %s173, %s174
      %p183 = scmp.eq.s32.totalorder %s32, 0
      %p184 = por %p182, %p183
      %p185 = scmp.ne.s32.totalorder %s173, %s174
      %p186 = scmp.eq.s32.totalorder %s33, 1
      %p187 = por %p185, %p186
      %p189 = scmp.ne.s32.totalorder %s174, %s188
      %p190 = scmp.eq.s32.totalorder %s33, 0
      %p191 = por %p189, %p190
      %s193 = sadd.s32 %s192, 1
      %p196 = scmp.eq.s32.totalorder %s27, 1
      %p197 = scmp.ne.s32.totalorder %s192, %s194
      %p198 = scmp.eq.s32.totalorder %s27, 0
      %p199 = por %p197, %p198
      %p200 = scmp.ne.s32.totalorder %s192, %s194
      %p201 = scmp.eq.s32.totalorder %s32, 1
      %p202 = por %p200, %p201
      %p203 = scmp.ne.s32.totalorder %s194, %s195
      %p204 = scmp.eq.s32.totalorder %s32, 0
      %p205 = por %p203, %p204
      %p206 = scmp.ne.s32.totalorder %s194, %s195
      %p207 = scmp.eq.s32.totalorder %s33, 1
      %p208 = por %p206, %p207
      %p210 = scmp.ne.s32.totalorder %s195, %s209
      %p211 = scmp.eq.s32.totalorder %s33, 0
      %p212 = por %p210, %p211
      %s214 = sadd.s32 %s213, 1
      %p217 = scmp.eq.s32.totalorder %s27, 1
      %p218 = scmp.ne.s32.totalorder %s213, %s215
      %p219 = scmp.eq.s32.totalorder %s27, 0
      %p220 = por %p218, %p219
      %p221 = scmp.ne.s32.totalorder %s213, %s215
      %p222 = scmp.eq.s32.totalorder %s32, 1
      %p223 = por %p221, %p222
      %p224 = scmp.ne.s32.totalorder %s215, %s216
      %p225 = scmp.eq.s32.totalorder %s32, 0
      %p226 = por %p224, %p225
      %p227 = scmp.ne.s32.totalorder %s215, %s216
      %p228 = scmp.eq.s32.totalorder %s33, 1
      %p229 = por %p227, %p228
      %p231 = scmp.ne.s32.totalorder %s216, %s230
      %p232 = scmp.eq.s32.totalorder %s33, 0
      %p233 = por %p231, %p232
      %s235 = sadd.s32 %s234, 1
      %p238 = scmp.eq.s32.totalorder %s27, 1
      %p239 = scmp.ne.s32.totalorder %s234, %s236
      %p240 = scmp.eq.s32.totalorder %s27, 0
      %p241 = por %p239, %p240
      %p242 = scmp.ne.s32.totalorder %s234, %s236
      %p243 = scmp.eq.s32.totalorder %s32, 1
      %p244 = por %p242, %p243
      %p245 = scmp.ne.s32.totalorder %s236, %s237
      %p246 = scmp.eq.s32.totalorder %s32, 0
      %p247 = por %p245, %p246
      %p248 = scmp.ne.s32.totalorder %s236, %s237
      %p249 = scmp.eq.s32.totalorder %s33, 1
      %p250 = por %p248, %p249
      %p252 = scmp.ne.s32.totalorder %s237, %s251
      %p253 = scmp.eq.s32.totalorder %s33, 0
      %p254 = por %p252, %p253
      %s256 = sadd.s32 %s255, 1
      %p259 = scmp.eq.s32.totalorder %s27, 1
      %p260 = scmp.ne.s32.totalorder %s255, %s257
      %p261 = scmp.eq.s32.totalorder %s27, 0
      %p262 = por %p260, %p261
      %p263 = scmp.ne.s32.totalorder %s255, %s257
      %p264 = scmp.eq.s32.totalorder %s32, 1
      %p265 = por %p263, %p264
      %p266 = scmp.ne.s32.totalorder %s257, %s258
      %p267 = scmp.eq.s32.totalorder %s32, 0
      %p268 = por %p266, %p267
      %p269 = scmp.ne.s32.totalorder %s257, %s258
      %p270 = scmp.eq.s32.totalorder %s33, 1
      %p271 = por %p269, %p270
      %p273 = scmp.ne.s32.totalorder %s258, %s272
      %p274 = scmp.eq.s32.totalorder %s33, 0
      %p275 = por %p273, %p274
      %s276 = ssub.s32 %s27, %s34
      %p277 = scmp.eq.s32.totalorder %s276, 0
      %s279 = sadd.s32 %s278, 1
      %s280 = scalar_select %p277, %s278, %s279
      %p283 = pneg %p277
      %p284 = scmp.eq.s32.totalorder %s27, 1
      %p285 = por %p283, %p284
      %p286 = scmp.ne.s32.totalorder %s278, %s281
      %p287 = scmp.eq.s32.totalorder %s27, 0
      %p288 = por %p286, %p287
      %p289 = scmp.ne.s32.totalorder %s278, %s281
      %p290 = scmp.eq.s32.totalorder %s32, 1
      %p291 = por %p289, %p290
      %p292 = scmp.ne.s32.totalorder %s281, %s282
      %p293 = scmp.eq.s32.totalorder %s32, 0
      %p294 = por %p292, %p293
      %p295 = scmp.ne.s32.totalorder %s281, %s282
      %p296 = scmp.eq.s32.totalorder %s33, 1
      %p297 = por %p295, %p296
      %p299 = scmp.ne.s32.totalorder %s282, %s298
      %p300 = scmp.eq.s32.totalorder %s33, 0
      %p301 = por %p299, %p300
      %s302 = ssub.s32 %s27, %s34
      %p303 = scmp.eq.s32.totalorder %s302, 0
      %s305 = sadd.s32 %s304, 1
      %s306 = scalar_select %p303, %s304, %s305
      %p309 = pneg %p303
      %p310 = scmp.eq.s32.totalorder %s27, 1
      %p311 = por %p309, %p310
      %p312 = scmp.ne.s32.totalorder %s304, %s307
      %p313 = scmp.eq.s32.totalorder %s27, 0
      %p314 = por %p312, %p313
      %p315 = scmp.ne.s32.totalorder %s304, %s307
      %p316 = scmp.eq.s32.totalorder %s32, 1
      %p317 = por %p315, %p316
      %p318 = scmp.ne.s32.totalorder %s307, %s308
      %p319 = scmp.eq.s32.totalorder %s32, 0
      %p320 = por %p318, %p319
      %p321 = scmp.ne.s32.totalorder %s307, %s308
      %p322 = scmp.eq.s32.totalorder %s33, 1
      %p323 = por %p321, %p322
      %p325 = scmp.ne.s32.totalorder %s308, %s324
      %p326 = scmp.eq.s32.totalorder %s33, 0
      %p327 = por %p325, %p326
      %p328 = scmp.le.s32.totalorder 1, %s27
      %p329 = scmp.lt.s32.totalorder %s27, 3
      %p330 = pnand %p328, %p329
      %p331 = pneg %p330
      // Predicated region
      $region9: #{_forward_impl.1} parent=5 // pred_check
        _
      $region10: #{_forward_impl.1} parent=5 // pred_check_branch
        %333 = sbr.rel (%p330) target = $region12
      $region11: #{_forward_impl.1} parent=5 // pred_region
        %s334 = ssub.s32 %s27, 1
        // Predicated region
        $region13: #{_forward_impl.1} parent=11 // pred_check
          %p335 = pneg %p100
        $region14: #{_forward_impl.1} parent=11 // pred_check_branch
          %337 = sbr.rel (%p335) target = $region16
        $region15: #{_forward_impl.1} parent=11 // pred_region
          %s339 = ssub.s32 768, 768
          %340 = vsyncadd [#allocation8], %s339
          %s341 = sshll.u32 [#allocation9], 4
          %s342 = int_to_ptr.vmem [resolvable:$true] %s341
          %347 = dma.hbm_to_vmem [thread:$0]  %s2, 768, %s342, [#allocation8], 64, 64, 4
        $region16: #{_forward_impl.1} parent=11 // pred_fallthru
          _
        // Predicated region
        $region17: #{_forward_impl.1} parent=11 // pred_check
          %p348 = pneg %p121
        $region18: #{_forward_impl.1} parent=11 // pred_check_branch
          %350 = sbr.rel (%p348) target = $region20
        $region19: #{_forward_impl.1} parent=11 // pred_region
          _
        $region20: #{_forward_impl.1} parent=11 // pred_fallthru
          _
        // Predicated region
        $region21: #{_forward_impl.1} parent=11 // pred_check
          %p351 = pneg %p142
        $region22: #{_forward_impl.1} parent=11 // pred_check_branch
          %353 = sbr.rel (%p351) target = $region24
        $region23: #{_forward_impl.1} parent=11 // pred_region
          %s355 = ssub.s32 3072, 3072
          %356 = vsyncadd [#allocation11], %s355
          %s357 = sshll.u32 [#allocation10], 4
          %s358 = int_to_ptr.vmem [resolvable:$true] %s357
          %363 = dma.hbm_to_vmem [thread:$0]  %s4, 3072, %s358, [#allocation11], 64, 64, 4
        $region24: #{_forward_impl.1} parent=11 // pred_fallthru
          _
        // Predicated region
        $region25: #{_forward_impl.1} parent=11 // pred_check
          %p364 = pneg %p163
        $region26: #{_forward_impl.1} parent=11 // pred_check_branch
          %366 = sbr.rel (%p364) target = $region28
        $region27: #{_forward_impl.1} parent=11 // pred_region
          _
        $region28: #{_forward_impl.1} parent=11 // pred_fallthru
          _
        // Predicated region
        $region29: #{_forward_impl.1} parent=11 // pred_check
          %p367 = pneg %p184
        $region30: #{_forward_impl.1} parent=11 // pred_check_branch
          %369 = sbr.rel (%p367) target = $region32
        $region31: #{_forward_impl.1} parent=11 // pred_region
          %s371 = ssub.s32 3072, 3072
          %372 = vsyncadd [#allocation11], %s371
          %s373 = sshll.u32 [#allocation12], 4
          %s374 = int_to_ptr.vmem [resolvable:$true] %s373
          %379 = dma.hbm_to_vmem [thread:$0]  %s6, 3072, %s374, [#allocation11], 64, 64, 4
        $region32: #{_forward_impl.1} parent=11 // pred_fallthru
          _
        // Predicated region
        $region33: #{_forward_impl.1} parent=11 // pred_check
          %p380 = pneg %p205
        $region34: #{_forward_impl.1} parent=11 // pred_check_branch
          %382 = sbr.rel (%p380) target = $region36
        $region35: #{_forward_impl.1} parent=11 // pred_region
          _
        $region36: #{_forward_impl.1} parent=11 // pred_fallthru
          _
        // Predicated region
        $region37: #{_forward_impl.1} parent=11 // pred_check
          %p383 = pneg %p226
        $region38: #{_forward_impl.1} parent=11 // pred_check_branch
          %385 = sbr.rel (%p383) target = $region40
        $region39: #{_forward_impl.1} parent=11 // pred_region
          %s387 = ssub.s32 2048, 2048
          %388 = vsyncadd [#allocation14], %s387
          %s389 = sshll.u32 [#allocation13], 4
          %s390 = int_to_ptr.vmem [resolvable:$true] %s389
          %395 = dma.hbm_to_vmem [thread:$0]  %s8, 2048, %s390, [#allocation14], 128, 128, 8
        $region40: #{_forward_impl.1} parent=11 // pred_fallthru
          _
        // Predicated region
        $region41: #{_forward_impl.1} parent=11 // pred_check
          %p396 = pneg %p247
        $region42: #{_forward_impl.1} parent=11 // pred_check_branch
          %398 = sbr.rel (%p396) target = $region44
        $region43: #{_forward_impl.1} parent=11 // pred_region
          _
        $region44: #{_forward_impl.1} parent=11 // pred_fallthru
          _
        // Predicated region
        $region45: #{_forward_impl.1} parent=11 // pred_check
          %p399 = pneg %p268
        $region46: #{_forward_impl.1} parent=11 // pred_check_branch
          %401 = sbr.rel (%p399) target = $region48
        $region47: #{_forward_impl.1} parent=11 // pred_region
          %s403 = ssub.s32 512, 512
          %404 = vsyncadd [#allocation14], %s403
          %s406 = sshll.u32 [#allocation15], 4
          %s407 = int_to_ptr.vmem [resolvable:$true] %s406
          %409 = dma.hbm_to_vmem [thread:$0]  %s10, 512, %s407, [#allocation14]
        $region48: #{_forward_impl.1} parent=11 // pred_fallthru
          _
      $region12: #{_forward_impl.1} parent=5 // pred_fallthru
        _
      %p410 = scmp.lt.s32.totalorder %s27, 2
      // Predicated region
      $region49: #{_forward_impl.1} parent=5 // pred_check
        %p411 = pneg %p410
      $region50: #{_forward_impl.1} parent=5 // pred_check_branch
        %413 = sbr.rel (%p411) target = $region52
      $region51: #{_forward_impl.1} parent=5 // pred_region
        // Predicated region
        $region53: #{_forward_impl.1} parent=51 // pred_check
          %p414 = pneg %p47
        $region54: #{_forward_impl.1} parent=51 // pred_check_branch
          %416 = sbr.rel (%p414) target = $region56
        $region55: #{_forward_impl.1} parent=51 // pred_region
          %s417 = sand.u32 %s37, 1
          %s418 = scalar_lea.sflag [#allocation6], %s417
          %s419 = sand.u32 %s37, 1
          %s420 = smul.addr %s419, 16
          %s421 = scalar_lea.vmem [#allocation5], %s420
          %s423 = ssub.s32 256, 256
          %424 = vsyncadd %s418, %s423
          %s425 = smul.addr %s27, 2
          %s426 = smul.addr %s425, 128
          %s427 = scalar_lea.hbm %s0, %s426
          %s428 = sshll.u32 %s421, 4
          %s429 = int_to_ptr.vmem [resolvable:$true] %s428
          %434 = dma.hbm_to_vmem [thread:$0]  %s427, 256, %s429, %s418, 128, 128, 8
        $region56: #{_forward_impl.1} parent=51 // pred_fallthru
          _
        // Predicated region
        $region57: #{_forward_impl.1} parent=51 // pred_check
          %p435 = pneg %p73
        $region58: #{_forward_impl.1} parent=51 // pred_check_branch
          %437 = sbr.rel (%p435) target = $region60
        $region59: #{_forward_impl.1} parent=51 // pred_region
          %s438 = sand.u32 %s27, 1
          %s439 = scalar_lea.sflag [#allocation8], %s438
          %s440 = sand.u32 %s63, 1
          %s441 = smul.addr %s440, 16
          %s442 = scalar_lea.vmem [#allocation7], %s441
          %s444 = ssub.s32 256, 256
          %445 = vsyncadd %s439, %s444
          %s446 = smul.addr %s27, 2
          %s447 = smul.addr %s446, 128
          %s448 = scalar_lea.hbm %s1, %s447
          %s449 = sshll.u32 %s442, 4
          %s450 = int_to_ptr.vmem [resolvable:$true] %s449
          %455 = dma.hbm_to_vmem [thread:$0]  %s448, 256, %s450, %s439, 128, 128, 8
        $region60: #{_forward_impl.1} parent=51 // pred_fallthru
          _
      $region52: #{_forward_impl.1} parent=5 // pred_fallthru
        _
      %p456 = scmp.le.s32.totalorder 1, %s27
      %p457 = scmp.lt.s32.totalorder %s27, 3
      %p458 = pnand %p456, %p457
      %p459 = pneg %p458
      // Predicated region
      $region61: #{_forward_impl.1} parent=5 // pred_check
        _
      $region62: #{_forward_impl.1} parent=5 // pred_check_branch
        %461 = sbr.rel (%p458) target = $region64
      $region63: #{_forward_impl.1} parent=5 // pred_region
        %s462 = ssub.s32 %s27, 1
        %s463 = sand.u32 %s40, 1
        %s464 = scalar_lea.sflag [#allocation6], %s463
        %s465 = sand.u32 %s40, 1
        %s466 = smul.addr %s465, 16
        %s467 = scalar_lea.vmem [#allocation5], %s466
        // Predicated region
        $region65: #{_forward_impl.1} parent=63 // pred_check
          %p468 = pneg %p53
        $region66: #{_forward_impl.1} parent=63 // pred_check_branch
          %470 = sbr.rel (%p468) target = $region68
        $region67: #{_forward_impl.1} parent=63 // pred_region
          %471 = dma.done %s464, 256
        $region68: #{_forward_impl.1} parent=63 // pred_fallthru
          _
        %s472 = sand.u32 %s32, 1
        %s473 = scalar_lea.sflag [#allocation8], %s472
        %s474 = sand.u32 %s66, 1
        %s475 = smul.addr %s474, 16
        %s476 = scalar_lea.vmem [#allocation7], %s475
        // Predicated region
        $region69: #{_forward_impl.1} parent=63 // pred_check
          %p477 = pneg %p79
        $region70: #{_forward_impl.1} parent=63 // pred_check_branch
          %479 = sbr.rel (%p477) target = $region72
        $region71: #{_forward_impl.1} parent=63 // pred_region
          %480 = dma.done %s473, 256
        $region72: #{_forward_impl.1} parent=63 // pred_fallthru
          _
        // Predicated region
        $region73: #{_forward_impl.1} parent=63 // pred_check
          %p481 = pneg %p100
        $region74: #{_forward_impl.1} parent=63 // pred_check_branch
          %483 = sbr.rel (%p481) target = $region76
        $region75: #{_forward_impl.1} parent=63 // pred_region
          %484 = dma.done [#allocation8], 768
        $region76: #{_forward_impl.1} parent=63 // pred_fallthru
          _
        // Predicated region
        $region77: #{_forward_impl.1} parent=63 // pred_check
          %p485 = pneg %p142
        $region78: #{_forward_impl.1} parent=63 // pred_check_branch
          %487 = sbr.rel (%p485) target = $region80
        $region79: #{_forward_impl.1} parent=63 // pred_region
          %488 = dma.done [#allocation11], 3072
        $region80: #{_forward_impl.1} parent=63 // pred_fallthru
          _
        // Predicated region
        $region81: #{_forward_impl.1} parent=63 // pred_check
          %p489 = pneg %p184
        $region82: #{_forward_impl.1} parent=63 // pred_check_branch
          %491 = sbr.rel (%p489) target = $region84
        $region83: #{_forward_impl.1} parent=63 // pred_region
          %492 = dma.done [#allocation11], 3072
        $region84: #{_forward_impl.1} parent=63 // pred_fallthru
          _
        // Predicated region
        $region85: #{_forward_impl.1} parent=63 // pred_check
          %p493 = pneg %p226
        $region86: #{_forward_impl.1} parent=63 // pred_check_branch
          %495 = sbr.rel (%p493) target = $region88
        $region87: #{_forward_impl.1} parent=63 // pred_region
          %496 = dma.done [#allocation14], 2048
        $region88: #{_forward_impl.1} parent=63 // pred_fallthru
          _
        // Predicated region
        $region89: #{_forward_impl.1} parent=63 // pred_check
          %p497 = pneg %p268
        $region90: #{_forward_impl.1} parent=63 // pred_check_branch
          %499 = sbr.rel (%p497) target = $region92
        $region91: #{_forward_impl.1} parent=63 // pred_region
          %500 = dma.done [#allocation14], 512
        $region92: #{_forward_impl.1} parent=63 // pred_fallthru
          _
        %s501 = sand.u32 %s40, 1
        %s502 = scalar_lea.sflag [#allocation6], %s501
        %s503 = sand.u32 %s40, 1
        %s504 = smul.addr %s503, 16
        %s505 = scalar_lea.vmem [#allocation5], %s504
        %p506 = pneg %p53
        %p507 = pneg %p50
        %s508 = sand.u32 %s32, 1
        %s509 = scalar_lea.sflag [#allocation8], %s508
        %s510 = sand.u32 %s66, 1
        %s511 = smul.addr %s510, 16
        %s512 = scalar_lea.vmem [#allocation7], %s511
        %p513 = pneg %p79
        %p514 = pneg %p76
        %p515 = pneg %p100
        %p516 = pneg %p97
        %p517 = pneg %p121
        %p518 = pneg %p118
        %p519 = pneg %p142
        %p520 = pneg %p139
        %p521 = pneg %p163
        %p522 = pneg %p160
        %p523 = pneg %p184
        %p524 = pneg %p181
        %p525 = pneg %p205
        %p526 = pneg %p202
        %p527 = pneg %p226
        %p528 = pneg %p223
        %p529 = pneg %p247
        %p530 = pneg %p244
        %p531 = pneg %p268
        %p532 = pneg %p265
        %p533 = pneg %p294
        %p534 = pneg %p291
        %p535 = scmp.lt.s32.totalorder %s32, 1
        %s536 = scalar_select %p535, %s32, 1
        %s537 = smul.addr %s536, 4
        %s538 = scalar_lea.vmem %s11, %s537
        %p539 = pneg %p320
        %p540 = pneg %p317
        %p541 = scmp.lt.s32.totalorder %s32, 1
        %s542 = scalar_select %p541, %s32, 1
        %s543 = scalar_lea.vmem %s12, %s542
        %p544 = scmp.lt.s32.totalorder %s32, 1
        %s545 = scalar_select %p544, %s32, 1
        %s546 = smul.addr %s545, 4
        %s547 = scalar_lea.vmem %s11, %s546
        %p548 = scmp.lt.s32.totalorder %s32, 1
        %s549 = scalar_select %p548, %s32, 1
        %s550 = scalar_lea.vmem %s12, %s549
        %vm552 = vcmask 253952
        %553 = vst.msk [vmem:[#allocation2] sm:$0x1] %vm552, 0.0
        %554 = vst.msk [vmem:[#allocation2 + $0x11] sm:$0x1] %vm552, 0.0
        %v555 = vld [vmem:[%s467] sm:$0xff]
        %v556 = vld [vmem:[%s467 + $0x8] sm:$0xff]
        %vm557 = vcmask 130048
        %558 = vst.msk [vmem:[#allocation2 + $0x1] sm:$0xff] %vm557, %v555
        %559 = vst.msk [vmem:[#allocation2 + $0x9] sm:$0xff] %vm557, %v556
        %v560 = vld [vmem:[%s476] sm:$0xff]
        %v561 = vld [vmem:[%s476 + $0x8] sm:$0xff]
        %564 = vrot.lane.b32.xlu0 %v560, 16
        %v565 = vpop.permute.xlu0 %564
        %566 = vrot.lane.b32.xlu0 %v561, 16
        %v567 = vpop.permute.xlu0 %566
        %vm570 = vcmask 261248
        %571 = vst.msk [vmem:[#allocation2 + $0x1] sm:$0xff] %vm570, %v565
        %572 = vst.msk [vmem:[#allocation2 + $0x9] sm:$0xff] %vm570, %v567
        %v573 = vld [vmem:[#allocation2] ss:$2 sm:$0xff]
        %s574 = scalar_lea.vmem [#allocation2], 1
        %v575 = vld [vmem:[%s574] ss:$2 sm:$0xff]
        %s576 = scalar_lea.vmem [#allocation2], 2
        %v577 = vld [vmem:[%s576] ss:$2 sm:$0xff]
        %579 = vrot.lane.b32.xlu0 %v575, 32
        %v580 = vpop.permute.xlu0 %579
        %583 = vrot.lane.b32.xlu0 %v577, 64
        %v584 = vpop.permute.xlu0 %583
        %vm586 = vcmask 261120
        %v587 = vsel %vm586, %v573, %v580
        %vm588 = vcmask 523264
        %v589 = vsel %vm588, %v587, %v584
        %v590 = vpack.c.bf16 %v589, %v589
        %v591 = vld [vmem:[#allocation9] sm:$0xf]
        %v592 = vld [vmem:[#allocation9 + $0x4] sm:$0xf]
        %v593 = vld [vmem:[#allocation9 + $0x8] sm:$0xf]
        %v594 = vld [vmem:[#allocation9 + $0xc] sm:$0xf]
        %v595 = vld [vmem:[#allocation9 + $0x10] sm:$0xf]
        %v596 = vld [vmem:[#allocation9 + $0x14] sm:$0xf]
        %v597 = vld [vmem:[#allocation9 + $0x18] sm:$0xf]
        %v598 = vld [vmem:[#allocation9 + $0x1c] sm:$0xf]
        %v599 = vld [vmem:[#allocation9 + $0x20] sm:$0xf]
        %v600 = vld [vmem:[#allocation9 + $0x24] sm:$0xf]
        %v601 = vld [vmem:[#allocation9 + $0x28] sm:$0xf]
        %v602 = vld [vmem:[#allocation9 + $0x2c] sm:$0xf]
        %v603 = vld [vmem:[%s3] sm:$0x1]
        %v605 = vlaneseq
        %v606 = vshrl.u32 %v605, 7
        %v607 = vsub.s32 0, %v606
        %v608 = vrot.slane %v603, %v607
        %v622 = vunpack.c.l.b16 %v591
        %v623 = vunpack.c.l.b16 %v592
        %v624 = vunpack.c.l.b16 %v593
        %v625 = vunpack.c.l.b16 %v594
        %v626 = vunpack.c.l.b16 %v595
        %v627 = vunpack.c.l.b16 %v596
        %v628 = vunpack.c.l.b16 %v597
        %v629 = vunpack.c.l.b16 %v598
        %v630 = vunpack.c.l.b16 %v599
        %v631 = vunpack.c.l.b16 %v600
        %v632 = vunpack.c.l.b16 %v601
        %v633 = vunpack.c.l.b16 %v602
        %v634 = vpack.c.b16 %v623, %v622
        %v635 = vpack.c.b16 %v625, %v624
        %v636 = vpack.c.b16 %v627, %v626
        %v637 = vpack.c.b16 %v629, %v628
        %v638 = vpack.c.b16 %v631, %v630
        %v639 = vpack.c.b16 %v633, %v632
        %vm646 = vcmask 785408
        %v648 = vsel %vm646, %v590, 0
        %650 = vmatprep.subr.bf16.mxu0 0
        %651 = vmatpush1.bf16.msra.mxu0 0
        %652 = vmatprep.subr.bf16.mxu0 0
        %653 = vmatpush1.bf16.msra.mxu0 0
        %654 = vmatprep.subr.bf16.mxu0 0
        %655 = vmatpush1.bf16.msra.mxu0 %v639
        %656 = vmatprep.subr.bf16.mxu0 0
        %657 = vmatpush1.bf16.msra.mxu0 %v638
        %658 = vmatprep.subr.bf16.mxu0 0
        %659 = vmatpush1.bf16.msra.mxu0 %v637
        %660 = vmatprep.subr.bf16.mxu0 0
        %661 = vmatpush1.bf16.msra.mxu0 %v636
        %662 = vmatprep.subr.bf16.mxu0 0
        %663 = vmatpush1.bf16.msra.mxu0 %v635
        %664 = vmatprep.subr.bf16.mxu0 0
        %665 = vmatpush1.bf16.msra.mxu0 %v634
        %666 = vmatprep.subr.bf16.mxu0 0
        %667 = vmatpush2.bf16.msra.mxu0 0
        %668 = vmatprep.subr.bf16.mxu0 0
        %669 = vmatpush2.bf16.msra.mxu0 0
        %670 = vmatprep.subr.bf16.mxu0 0
        %671 = vmatpush2.bf16.msra.mxu0 0
        %672 = vmatprep.subr.bf16.mxu0 0
        %673 = vmatpush2.bf16.msra.mxu0 0
        %674 = vmatprep.subr.bf16.mxu0 0
        %675 = vmatpush2.bf16.msra.mxu0 0
        %676 = vmatprep.subr.bf16.mxu0 0
        %677 = vmatpush2.bf16.msra.mxu0 0
        %678 = vmatprep.subr.bf16.mxu0 0
        %679 = vmatpush2.bf16.msra.mxu0 0
        %680 = vmatprep.subr.bf16.mxu0 0
        %681 = vmatpush2.bf16.msra.mxu0 0
        %682 = vmatprep.mubr.bf16.mxu0 0
        %683 = vmatmul.mubr.bf16.gmra.mxu0 %v648
        %v684 = vpop.f32.mrf.mxu0
        %v685 = vadd.f32 %v608, %v684
        %v686 = vpop.f32.mrf.mxu0
        %v687 = vpop.f32.mrf.mxu0
        %v688 = vpop.f32.mrf.mxu0
        %689 = vdwg.mxu0
        %vm690 = vcmp.ge.f32.partialorder %v685, 0.0
        %v691 = vmul.f32 %v685, 0.2
        %v692 = vsel %vm690, %v685, %v691
        %693 = vst [vmem:[#allocation3] sm:$0x1] 0.0
        %694 = vst [vmem:[#allocation3 + $0x9] sm:$0x1] 0.0
        %695 = vst [vmem:[#allocation3 + $0x1] sm:$0xff] %v692
        %v696 = vld [vmem:[#allocation3] ss:$2 sm:$0xf]
        %s697 = scalar_lea.vmem [#allocation3], 1
        %v698 = vld [vmem:[%s697] ss:$2 sm:$0xf]
        %s699 = scalar_lea.vmem [#allocation3], 2
        %v700 = vld [vmem:[%s699] ss:$2 sm:$0xf]
        %v701 = vpack.c.bf16 %v696, %v696
        %v702 = vpack.c.bf16 %v698, %v698
        %v703 = vpack.c.bf16 %v700, %v700
        %v704 = vld [vmem:[#allocation10] sm:$0xf]
        %v705 = vld [vmem:[#allocation10 + $0x4] sm:$0xf]
        %v706 = vld [vmem:[#allocation10 + $0x8] sm:$0xf]
        %v707 = vld [vmem:[#allocation10 + $0xc] sm:$0xf]
        %v708 = vld [vmem:[#allocation10 + $0x10] sm:$0xf]
        %v709 = vld [vmem:[#allocation10 + $0x14] sm:$0xf]
        %v710 = vld [vmem:[#allocation10 + $0x18] sm:$0xf]
        %v711 = vld [vmem:[#allocation10 + $0x1c] sm:$0xf]
        %v712 = vld [vmem:[#allocation10 + $0x20] sm:$0xf]
        %v713 = vld [vmem:[#allocation10 + $0x24] sm:$0xf]
        %v714 = vld [vmem:[#allocation10 + $0x28] sm:$0xf]
        %v715 = vld [vmem:[#allocation10 + $0x2c] sm:$0xf]
        %v716 = vld [vmem:[#allocation10 + $0x30] sm:$0xf]
        %v717 = vld [vmem:[#allocation10 + $0x34] sm:$0xf]
        %v718 = vld [vmem:[#allocation10 + $0x38] sm:$0xf]
        %v719 = vld [vmem:[#allocation10 + $0x3c] sm:$0xf]
        %v720 = vld [vmem:[#allocation10 + $0x40] sm:$0xf]
        %v721 = vld [vmem:[#allocation10 + $0x44] sm:$0xf]
        %v722 = vld [vmem:[#allocation10 + $0x48] sm:$0xf]
        %v723 = vld [vmem:[#allocation10 + $0x4c] sm:$0xf]
        %v724 = vld [vmem:[#allocation10 + $0x50] sm:$0xf]
        %v725 = vld [vmem:[#allocation10 + $0x54] sm:$0xf]
        %v726 = vld [vmem:[#allocation10 + $0x58] sm:$0xf]
        %v727 = vld [vmem:[#allocation10 + $0x5c] sm:$0xf]
        %v728 = vld [vmem:[#allocation10 + $0x60] sm:$0xf]
        %v729 = vld [vmem:[#allocation10 + $0x64] sm:$0xf]
        %v730 = vld [vmem:[#allocation10 + $0x68] sm:$0xf]
        %v731 = vld [vmem:[#allocation10 + $0x6c] sm:$0xf]
        %v732 = vld [vmem:[#allocation10 + $0x70] sm:$0xf]
        %v733 = vld [vmem:[#allocation10 + $0x74] sm:$0xf]
        %v734 = vld [vmem:[#allocation10 + $0x78] sm:$0xf]
        %v735 = vld [vmem:[#allocation10 + $0x7c] sm:$0xf]
        %v736 = vld [vmem:[#allocation10 + $0x80] sm:$0xf]
        %v737 = vld [vmem:[#allocation10 + $0x84] sm:$0xf]
        %v738 = vld [vmem:[#allocation10 + $0x88] sm:$0xf]
        %v739 = vld [vmem:[#allocation10 + $0x8c] sm:$0xf]
        %v740 = vld [vmem:[#allocation10 + $0x90] sm:$0xf]
        %v741 = vld [vmem:[#allocation10 + $0x94] sm:$0xf]
        %v742 = vld [vmem:[#allocation10 + $0x98] sm:$0xf]
        %v743 = vld [vmem:[#allocation10 + $0x9c] sm:$0xf]
        %v744 = vld [vmem:[#allocation10 + $0xa0] sm:$0xf]
        %v745 = vld [vmem:[#allocation10 + $0xa4] sm:$0xf]
        %v746 = vld [vmem:[#allocation10 + $0xa8] sm:$0xf]
        %v747 = vld [vmem:[#allocation10 + $0xac] sm:$0xf]
        %v748 = vld [vmem:[#allocation10 + $0xb0] sm:$0xf]
        %v749 = vld [vmem:[#allocation10 + $0xb4] sm:$0xf]
        %v750 = vld [vmem:[#allocation10 + $0xb8] sm:$0xf]
        %v751 = vld [vmem:[#allocation10 + $0xbc] sm:$0xf]
        %v752 = vld [vmem:[%s5] sm:$0x1]
        %v754 = vlaneseq
        %v755 = vshrl.u32 %v754, 7
        %v756 = vsub.s32 0, %v755
        %v757 = vrot.slane %v752, %v756
        %v807 = vunpack.c.l.b16 %v704
        %v808 = vunpack.c.l.b16 %v705
        %v809 = vunpack.c.l.b16 %v706
        %v810 = vunpack.c.l.b16 %v707
        %v811 = vunpack.c.l.b16 %v708
        %v812 = vunpack.c.l.b16 %v709
        %v813 = vunpack.c.l.b16 %v710
        %v814 = vunpack.c.l.b16 %v711
        %v815 = vunpack.c.l.b16 %v712
        %v816 = vunpack.c.l.b16 %v713
        %v817 = vunpack.c.l.b16 %v714
        %v818 = vunpack.c.l.b16 %v715
        %v819 = vunpack.c.l.b16 %v716
        %v820 = vunpack.c.l.b16 %v717
        %v821 = vunpack.c.l.b16 %v718
        %v822 = vunpack.c.l.b16 %v719
        %v823 = vunpack.c.l.b16 %v720
        %v824 = vunpack.c.l.b16 %v721
        %v825 = vunpack.c.l.b16 %v722
        %v826 = vunpack.c.l.b16 %v723
        %v827 = vunpack.c.l.b16 %v724
        %v828 = vunpack.c.l.b16 %v725
        %v829 = vunpack.c.l.b16 %v726
        %v830 = vunpack.c.l.b16 %v727
        %v831 = vunpack.c.l.b16 %v728
        %v832 = vunpack.c.l.b16 %v729
        %v833 = vunpack.c.l.b16 %v730
        %v834 = vunpack.c.l.b16 %v731
        %v835 = vunpack.c.l.b16 %v732
        %v836 = vunpack.c.l.b16 %v733
        %v837 = vunpack.c.l.b16 %v734
        %v838 = vunpack.c.l.b16 %v735
        %v839 = vunpack.c.l.b16 %v736
        %v840 = vunpack.c.l.b16 %v737
        %v841 = vunpack.c.l.b16 %v738
        %v842 = vunpack.c.l.b16 %v739
        %v843 = vunpack.c.l.b16 %v740
        %v844 = vunpack.c.l.b16 %v741
        %v845 = vunpack.c.l.b16 %v742
        %v846 = vunpack.c.l.b16 %v743
        %v847 = vunpack.c.l.b16 %v744
        %v848 = vunpack.c.l.b16 %v745
        %v849 = vunpack.c.l.b16 %v746
        %v850 = vunpack.c.l.b16 %v747
        %v851 = vunpack.c.l.b16 %v748
        %v852 = vunpack.c.l.b16 %v749
        %v853 = vunpack.c.l.b16 %v750
        %v854 = vunpack.c.l.b16 %v751
        %v855 = vpack.c.b16 %v808, %v807
        %v856 = vpack.c.b16 %v810, %v809
        %v857 = vpack.c.b16 %v812, %v811
        %v858 = vpack.c.b16 %v814, %v813
        %v859 = vpack.c.b16 %v816, %v815
        %v860 = vpack.c.b16 %v818, %v817
        %v861 = vpack.c.b16 %v820, %v819
        %v862 = vpack.c.b16 %v822, %v821
        %v863 = vpack.c.b16 %v824, %v823
        %v864 = vpack.c.b16 %v826, %v825
        %v865 = vpack.c.b16 %v828, %v827
        %v866 = vpack.c.b16 %v830, %v829
        %v867 = vpack.c.b16 %v832, %v831
        %v868 = vpack.c.b16 %v834, %v833
        %v869 = vpack.c.b16 %v836, %v835
        %v870 = vpack.c.b16 %v838, %v837
        %v871 = vpack.c.b16 %v840, %v839
        %v872 = vpack.c.b16 %v842, %v841
        %v873 = vpack.c.b16 %v844, %v843
        %v874 = vpack.c.b16 %v846, %v845
        %v875 = vpack.c.b16 %v848, %v847
        %v876 = vpack.c.b16 %v850, %v849
        %v877 = vpack.c.b16 %v852, %v851
        %v878 = vpack.c.b16 %v854, %v853
        %903 = vmatprep.subr.bf16.mxu0 0
        %904 = vmatpush1.bf16.msra.mxu0 %v862
        %905 = vmatprep.subr.bf16.mxu0 0
        %906 = vmatpush1.bf16.msra.mxu0 %v861
        %907 = vmatprep.subr.bf16.mxu0 0
        %908 = vmatpush1.bf16.msra.mxu0 %v860
        %909 = vmatprep.subr.bf16.mxu0 0
        %910 = vmatpush1.bf16.msra.mxu0 %v859
        %911 = vmatprep.subr.bf16.mxu0 0
        %912 = vmatpush1.bf16.msra.mxu0 %v858
        %913 = vmatprep.subr.bf16.mxu0 0
        %914 = vmatpush1.bf16.msra.mxu0 %v857
        %915 = vmatprep.subr.bf16.mxu0 0
        %916 = vmatpush1.bf16.msra.mxu0 %v856
        %917 = vmatprep.subr.bf16.mxu0 0
        %918 = vmatpush1.bf16.msra.mxu0 %v855
        %919 = vmatprep.subr.bf16.mxu0 0
        %920 = vmatpush2.bf16.msra.mxu0 %v870
        %921 = vmatprep.subr.bf16.mxu0 0
        %922 = vmatpush2.bf16.msra.mxu0 %v869
        %923 = vmatprep.subr.bf16.mxu0 0
        %924 = vmatpush2.bf16.msra.mxu0 %v868
        %925 = vmatprep.subr.bf16.mxu0 0
        %926 = vmatpush2.bf16.msra.mxu0 %v867
        %927 = vmatprep.subr.bf16.mxu0 0
        %928 = vmatpush2.bf16.msra.mxu0 %v866
        %929 = vmatprep.subr.bf16.mxu0 0
        %930 = vmatpush2.bf16.msra.mxu0 %v865
        %931 = vmatprep.subr.bf16.mxu0 0
        %932 = vmatpush2.bf16.msra.mxu0 %v864
        %933 = vmatprep.subr.bf16.mxu0 0
        %934 = vmatpush2.bf16.msra.mxu0 %v863
        %935 = vmatprep.mubr.bf16.mxu0 %v702
        %936 = vmatmul.mubr.bf16.gmra.mxu0 %v701
        %v937 = vpop.f32.mrf.mxu0
        %v938 = vadd.f32 %v757, %v937
        %v939 = vpop.f32.mrf.mxu0
        %v940 = vpop.f32.mrf.mxu0
        %v941 = vpop.f32.mrf.mxu0
        %942 = vdwg.mxu0
        %943 = vmatprep.subr.bf16.mxu0 0
        %944 = vmatpush1.bf16.msra.mxu0 %v878
        %945 = vmatprep.subr.bf16.mxu0 0
        %946 = vmatpush1.bf16.msra.mxu0 %v877
        %947 = vmatprep.subr.bf16.mxu0 0
        %948 = vmatpush1.bf16.msra.mxu0 %v876
        %949 = vmatprep.subr.bf16.mxu0 0
        %950 = vmatpush1.bf16.msra.mxu0 %v875
        %951 = vmatprep.subr.bf16.mxu0 0
        %952 = vmatpush1.bf16.msra.mxu0 %v874
        %953 = vmatprep.subr.bf16.mxu0 0
        %954 = vmatpush1.bf16.msra.mxu0 %v873
        %955 = vmatprep.subr.bf16.mxu0 0
        %956 = vmatpush1.bf16.msra.mxu0 %v872
        %957 = vmatprep.subr.bf16.mxu0 0
        %958 = vmatpush1.bf16.msra.mxu0 %v871
        %959 = vmatprep.subr.bf16.mxu0 0
        %960 = vmatpush2.bf16.msra.mxu0 0
        %961 = vmatprep.subr.bf16.mxu0 0
        %962 = vmatpush2.bf16.msra.mxu0 0
        %963 = vmatprep.subr.bf16.mxu0 0
        %964 = vmatpush2.bf16.msra.mxu0 0
        %965 = vmatprep.subr.bf16.mxu0 0
        %966 = vmatpush2.bf16.msra.mxu0 0
        %967 = vmatprep.subr.bf16.mxu0 0
        %968 = vmatpush2.bf16.msra.mxu0 0
        %969 = vmatprep.subr.bf16.mxu0 0
        %970 = vmatpush2.bf16.msra.mxu0 0
        %971 = vmatprep.subr.bf16.mxu0 0
        %972 = vmatpush2.bf16.msra.mxu0 0
        %973 = vmatprep.subr.bf16.mxu0 0
        %974 = vmatpush2.bf16.msra.mxu0 0
        %975 = vmatprep.mubr.bf16.mxu0 0
        %976 = vmatmul.mubr.bf16.gmra.mxu0 %v703
        %v977 = vpop.f32.mrf.mxu0
        %v978 = vadd.f32 %v938, %v977
        %v979 = vpop.f32.mrf.mxu0
        %v980 = vpop.f32.mrf.mxu0
        %v981 = vpop.f32.mrf.mxu0
        %982 = vdwg.mxu0
        %vm983 = vcmp.ge.f32.partialorder %v978, 0.0
        %v984 = vmul.f32 %v978, 0.2
        %v985 = vsel %vm983, %v978, %v984
        %986 = vst [vmem:[#allocation4] sm:$0x1] 0.0
        %987 = vst [vmem:[#allocation4 + $0x5] sm:$0x1] 0.0
        %988 = vst [vmem:[#allocation4 + $0x1] sm:$0xf] %v985
        %v989 = vld [vmem:[#allocation4] ss:$2 sm:$0x3]
        %s990 = scalar_lea.vmem [#allocation4], 1
        %v991 = vld [vmem:[%s990] ss:$2 sm:$0x3]
        %s992 = scalar_lea.vmem [#allocation4], 2
        %v993 = vld [vmem:[%s992] ss:$2 sm:$0x3]
        %v994 = vpack.c.bf16 %v989, %v989
        %v995 = vpack.c.bf16 %v991, %v991
        %v996 = vpack.c.bf16 %v993, %v993
        %v997 = vld [vmem:[#allocation12] sm:$0xf]
        %v998 = vld [vmem:[#allocation12 + $0x4] sm:$0xf]
        %v999 = vld [vmem:[#allocation12 + $0x8] sm:$0xf]
        %v1000 = vld [vmem:[#allocation12 + $0xc] sm:$0xf]
        %v1001 = vld [vmem:[#allocation12 + $0x10] sm:$0xf]
        %v1002 = vld [vmem:[#allocation12 + $0x14] sm:$0xf]
        %v1003 = vld [vmem:[#allocation12 + $0x18] sm:$0xf]
        %v1004 = vld [vmem:[#allocation12 + $0x1c] sm:$0xf]
        %v1005 = vld [vmem:[#allocation12 + $0x20] sm:$0xf]
        %v1006 = vld [vmem:[#allocation12 + $0x24] sm:$0xf]
        %v1007 = vld [vmem:[#allocation12 + $0x28] sm:$0xf]
        %v1008 = vld [vmem:[#allocation12 + $0x2c] sm:$0xf]
        %v1009 = vld [vmem:[#allocation12 + $0x30] sm:$0xf]
        %v1010 = vld [vmem:[#allocation12 + $0x34] sm:$0xf]
        %v1011 = vld [vmem:[#allocation12 + $0x38] sm:$0xf]
        %v1012 = vld [vmem:[#allocation12 + $0x3c] sm:$0xf]
        %v1013 = vld [vmem:[#allocation12 + $0x40] sm:$0xf]
        %v1014 = vld [vmem:[#allocation12 + $0x44] sm:$0xf]
        %v1015 = vld [vmem:[#allocation12 + $0x48] sm:$0xf]
        %v1016 = vld [vmem:[#allocation12 + $0x4c] sm:$0xf]
        %v1017 = vld [vmem:[#allocation12 + $0x50] sm:$0xf]
        %v1018 = vld [vmem:[#allocation12 + $0x54] sm:$0xf]
        %v1019 = vld [vmem:[#allocation12 + $0x58] sm:$0xf]
        %v1020 = vld [vmem:[#allocation12 + $0x5c] sm:$0xf]
        %v1021 = vld [vmem:[#allocation12 + $0x60] sm:$0xf]
        %v1022 = vld [vmem:[#allocation12 + $0x64] sm:$0xf]
        %v1023 = vld [vmem:[#allocation12 + $0x68] sm:$0xf]
        %v1024 = vld [vmem:[#allocation12 + $0x6c] sm:$0xf]
        %v1025 = vld [vmem:[#allocation12 + $0x70] sm:$0xf]
        %v1026 = vld [vmem:[#allocation12 + $0x74] sm:$0xf]
        %v1027 = vld [vmem:[#allocation12 + $0x78] sm:$0xf]
        %v1028 = vld [vmem:[#allocation12 + $0x7c] sm:$0xf]
        %v1029 = vld [vmem:[#allocation12 + $0x80] sm:$0xf]
        %v1030 = vld [vmem:[#allocation12 + $0x84] sm:$0xf]
        %v1031 = vld [vmem:[#allocation12 + $0x88] sm:$0xf]
        %v1032 = vld [vmem:[#allocation12 + $0x8c] sm:$0xf]
        %v1033 = vld [vmem:[#allocation12 + $0x90] sm:$0xf]
        %v1034 = vld [vmem:[#allocation12 + $0x94] sm:$0xf]
        %v1035 = vld [vmem:[#allocation12 + $0x98] sm:$0xf]
        %v1036 = vld [vmem:[#allocation12 + $0x9c] sm:$0xf]
        %v1037 = vld [vmem:[#allocation12 + $0xa0] sm:$0xf]
        %v1038 = vld [vmem:[#allocation12 + $0xa4] sm:$0xf]
        %v1039 = vld [vmem:[#allocation12 + $0xa8] sm:$0xf]
        %v1040 = vld [vmem:[#allocation12 + $0xac] sm:$0xf]
        %v1041 = vld [vmem:[#allocation12 + $0xb0] sm:$0xf]
        %v1042 = vld [vmem:[#allocation12 + $0xb4] sm:$0xf]
        %v1043 = vld [vmem:[#allocation12 + $0xb8] sm:$0xf]
        %v1044 = vld [vmem:[#allocation12 + $0xbc] sm:$0xf]
        %v1045 = vld [vmem:[%s7] sm:$0x1]
        %v1047 = vlaneseq
        %v1048 = vshrl.u32 %v1047, 7
        %v1049 = vsub.s32 0, %v1048
        %v1050 = vrot.slane %v1045, %v1049
        %v1100 = vunpack.c.l.b16 %v997
        %v1101 = vunpack.c.l.b16 %v998
        %v1102 = vunpack.c.l.b16 %v999
        %v1103 = vunpack.c.l.b16 %v1000
        %v1104 = vunpack.c.l.b16 %v1001
        %v1105 = vunpack.c.l.b16 %v1002
        %v1106 = vunpack.c.l.b16 %v1003
        %v1107 = vunpack.c.l.b16 %v1004
        %v1108 = vunpack.c.l.b16 %v1005
        %v1109 = vunpack.c.l.b16 %v1006
        %v1110 = vunpack.c.l.b16 %v1007
        %v1111 = vunpack.c.l.b16 %v1008
        %v1112 = vunpack.c.l.b16 %v1009
        %v1113 = vunpack.c.l.b16 %v1010
        %v1114 = vunpack.c.l.b16 %v1011
        %v1115 = vunpack.c.l.b16 %v1012
        %v1116 = vunpack.c.l.b16 %v1013
        %v1117 = vunpack.c.l.b16 %v1014
        %v1118 = vunpack.c.l.b16 %v1015
        %v1119 = vunpack.c.l.b16 %v1016
        %v1120 = vunpack.c.l.b16 %v1017
        %v1121 = vunpack.c.l.b16 %v1018
        %v1122 = vunpack.c.l.b16 %v1019
        %v1123 = vunpack.c.l.b16 %v1020
        %v1124 = vunpack.c.l.b16 %v1021
        %v1125 = vunpack.c.l.b16 %v1022
        %v1126 = vunpack.c.l.b16 %v1023
        %v1127 = vunpack.c.l.b16 %v1024
        %v1128 = vunpack.c.l.b16 %v1025
        %v1129 = vunpack.c.l.b16 %v1026
        %v1130 = vunpack.c.l.b16 %v1027
        %v1131 = vunpack.c.l.b16 %v1028
        %v1132 = vunpack.c.l.b16 %v1029
        %v1133 = vunpack.c.l.b16 %v1030
        %v1134 = vunpack.c.l.b16 %v1031
        %v1135 = vunpack.c.l.b16 %v1032
        %v1136 = vunpack.c.l.b16 %v1033
        %v1137 = vunpack.c.l.b16 %v1034
        %v1138 = vunpack.c.l.b16 %v1035
        %v1139 = vunpack.c.l.b16 %v1036
        %v1140 = vunpack.c.l.b16 %v1037
        %v1141 = vunpack.c.l.b16 %v1038
        %v1142 = vunpack.c.l.b16 %v1039
        %v1143 = vunpack.c.l.b16 %v1040
        %v1144 = vunpack.c.l.b16 %v1041
        %v1145 = vunpack.c.l.b16 %v1042
        %v1146 = vunpack.c.l.b16 %v1043
        %v1147 = vunpack.c.l.b16 %v1044
        %v1148 = vpack.c.b16 %v1101, %v1100
        %v1149 = vpack.c.b16 %v1103, %v1102
        %v1150 = vpack.c.b16 %v1105, %v1104
        %v1151 = vpack.c.b16 %v1107, %v1106
        %v1152 = vpack.c.b16 %v1109, %v1108
        %v1153 = vpack.c.b16 %v1111, %v1110
        %v1154 = vpack.c.b16 %v1113, %v1112
        %v1155 = vpack.c.b16 %v1115, %v1114
        %v1156 = vpack.c.b16 %v1117, %v1116
        %v1157 = vpack.c.b16 %v1119, %v1118
        %v1158 = vpack.c.b16 %v1121, %v1120
        %v1159 = vpack.c.b16 %v1123, %v1122
        %v1160 = vpack.c.b16 %v1125, %v1124
        %v1161 = vpack.c.b16 %v1127, %v1126
        %v1162 = vpack.c.b16 %v1129, %v1128
        %v1163 = vpack.c.b16 %v1131, %v1130
        %v1164 = vpack.c.b16 %v1133, %v1132
        %v1165 = vpack.c.b16 %v1135, %v1134
        %v1166 = vpack.c.b16 %v1137, %v1136
        %v1167 = vpack.c.b16 %v1139, %v1138
        %v1168 = vpack.c.b16 %v1141, %v1140
        %v1169 = vpack.c.b16 %v1143, %v1142
        %v1170 = vpack.c.b16 %v1145, %v1144
        %v1171 = vpack.c.b16 %v1147, %v1146
        %1196 = vmatprep.subr.bf16.mxu0 0
        %1197 = vmatpush1.bf16.msra.mxu0 %v1155
        %1198 = vmatprep.subr.bf16.mxu0 0
        %1199 = vmatpush1.bf16.msra.mxu0 %v1154
        %1200 = vmatprep.subr.bf16.mxu0 0
        %1201 = vmatpush1.bf16.msra.mxu0 %v1153
        %1202 = vmatprep.subr.bf16.mxu0 0
        %1203 = vmatpush1.bf16.msra.mxu0 %v1152
        %1204 = vmatprep.subr.bf16.mxu0 0
        %1205 = vmatpush1.bf16.msra.mxu0 %v1151
        %1206 = vmatprep.subr.bf16.mxu0 0
        %1207 = vmatpush1.bf16.msra.mxu0 %v1150
        %1208 = vmatprep.subr.bf16.mxu0 0
        %1209 = vmatpush1.bf16.msra.mxu0 %v1149
        %1210 = vmatprep.subr.bf16.mxu0 0
        %1211 = vmatpush1.bf16.msra.mxu0 %v1148
        %1212 = vmatprep.subr.bf16.mxu0 0
        %1213 = vmatpush2.bf16.msra.mxu0 %v1163
        %1214 = vmatprep.subr.bf16.mxu0 0
        %1215 = vmatpush2.bf16.msra.mxu0 %v1162
        %1216 = vmatprep.subr.bf16.mxu0 0
        %1217 = vmatpush2.bf16.msra.mxu0 %v1161
        %1218 = vmatprep.subr.bf16.mxu0 0
        %1219 = vmatpush2.bf16.msra.mxu0 %v1160
        %1220 = vmatprep.subr.bf16.mxu0 0
        %1221 = vmatpush2.bf16.msra.mxu0 %v1159
        %1222 = vmatprep.subr.bf16.mxu0 0
        %1223 = vmatpush2.bf16.msra.mxu0 %v1158
        %1224 = vmatprep.subr.bf16.mxu0 0
        %1225 = vmatpush2.bf16.msra.mxu0 %v1157
        %1226 = vmatprep.subr.bf16.mxu0 0
        %1227 = vmatpush2.bf16.msra.mxu0 %v1156
        %1228 = vmatprep.mubr.bf16.mxu0 %v995
        %1229 = vmatmul.mubr.bf16.gmra.mxu0 %v994
        %v1230 = vpop.f32.mrf.mxu0
        %v1231 = vadd.f32 %v1050, %v1230
        %v1232 = vpop.f32.mrf.mxu0
        %v1233 = vpop.f32.mrf.mxu0
        %v1234 = vpop.f32.mrf.mxu0
        %1235 = vdwg.mxu0
        %1236 = vmatprep.subr.bf16.mxu0 0
        %1237 = vmatpush1.bf16.msra.mxu0 %v1171
        %1238 = vmatprep.subr.bf16.mxu0 0
        %1239 = vmatpush1.bf16.msra.mxu0 %v1170
        %1240 = vmatprep.subr.bf16.mxu0 0
        %1241 = vmatpush1.bf16.msra.mxu0 %v1169
        %1242 = vmatprep.subr.bf16.mxu0 0
        %1243 = vmatpush1.bf16.msra.mxu0 %v1168
        %1244 = vmatprep.subr.bf16.mxu0 0
        %1245 = vmatpush1.bf16.msra.mxu0 %v1167
        %1246 = vmatprep.subr.bf16.mxu0 0
        %1247 = vmatpush1.bf16.msra.mxu0 %v1166
        %1248 = vmatprep.subr.bf16.mxu0 0
        %1249 = vmatpush1.bf16.msra.mxu0 %v1165
        %1250 = vmatprep.subr.bf16.mxu0 0
        %1251 = vmatpush1.bf16.msra.mxu0 %v1164
        %1252 = vmatprep.subr.bf16.mxu0 0
        %1253 = vmatpush2.bf16.msra.mxu0 0
        %1254 = vmatprep.subr.bf16.mxu0 0
        %1255 = vmatpush2.bf16.msra.mxu0 0
        %1256 = vmatprep.subr.bf16.mxu0 0
        %1257 = vmatpush2.bf16.msra.mxu0 0
        %1258 = vmatprep.subr.bf16.mxu0 0
        %1259 = vmatpush2.bf16.msra.mxu0 0
        %1260 = vmatprep.subr.bf16.mxu0 0
        %1261 = vmatpush2.bf16.msra.mxu0 0
        %1262 = vmatprep.subr.bf16.mxu0 0
        %1263 = vmatpush2.bf16.msra.mxu0 0
        %1264 = vmatprep.subr.bf16.mxu0 0
        %1265 = vmatpush2.bf16.msra.mxu0 0
        %1266 = vmatprep.subr.bf16.mxu0 0
        %1267 = vmatpush2.bf16.msra.mxu0 0
        %1268 = vmatprep.mubr.bf16.mxu0 0
        %1269 = vmatmul.mubr.bf16.gmra.mxu0 %v996
        %v1270 = vpop.f32.mrf.mxu0
        %v1271 = vadd.f32 %v1231, %v1270
        %v1272 = vpop.f32.mrf.mxu0
        %v1273 = vpop.f32.mrf.mxu0
        %v1274 = vpop.f32.mrf.mxu0
        %1275 = vdwg.mxu0
        %vm1276 = vcmp.ge.f32.partialorder %v1271, 0.0
        %v1277 = vmul.f32 %v1271, 0.2
        %v1278 = vsel %vm1276, %v1271, %v1277
        %vm1279 = vcmask 1041408
        %v1280 = vsel %vm1279, %v1278, 0.0
        %v1281 = vrot.slane %v1280, 4
        %v1282 = vadd.f32 %v1280, %v1281
        %v1283 = vrot.slane %v1282, 2
        %v1284 = vadd.f32 %v1282, %v1283
        %v1285 = vrot.slane %v1284, 1
        %v1286 = vadd.f32 %v1284, %v1285
        %v1287 = vld [vmem:[#allocation13] sm:$0xff]
        %v1288 = vld [vmem:[#allocation13 + $0x8] sm:$0xff]
        %v1289 = vld [vmem:[#allocation13 + $0x10] sm:$0xff]
        %v1290 = vld [vmem:[#allocation13 + $0x18] sm:$0xff]
        %v1291 = vld [vmem:[#allocation13 + $0x20] sm:$0xff]
        %v1292 = vld [vmem:[#allocation13 + $0x28] sm:$0xff]
        %v1293 = vld [vmem:[#allocation13 + $0x30] sm:$0xff]
        %v1294 = vld [vmem:[#allocation13 + $0x38] sm:$0xff]
        %v1295 = vld [vmem:[#allocation13 + $0x40] sm:$0xff]
        %v1296 = vld [vmem:[#allocation13 + $0x48] sm:$0xff]
        %v1297 = vld [vmem:[#allocation13 + $0x50] sm:$0xff]
        %v1298 = vld [vmem:[#allocation13 + $0x58] sm:$0xff]
        %v1299 = vld [vmem:[#allocation13 + $0x60] sm:$0xff]
        %v1300 = vld [vmem:[#allocation13 + $0x68] sm:$0xff]
        %v1301 = vld [vmem:[#allocation13 + $0x70] sm:$0xff]
        %v1302 = vld [vmem:[#allocation13 + $0x78] sm:$0xff]
        %v1303 = vld [vmem:[%s9] sm:$0x1]
        %1304 = vmatprep.subr.mxu0 0.0
        %1305 = vmatpush1.msra.mxu0 %v1302
        %1306 = vmatprep.subr.mxu0 0.0
        %1307 = vmatpush1.msra.mxu0 %v1301
        %1308 = vmatprep.subr.mxu0 0.0
        %1309 = vmatpush1.msra.mxu0 %v1300
        %1310 = vmatprep.subr.mxu0 0.0
        %1311 = vmatpush1.msra.mxu0 %v1299
        %1312 = vmatprep.subr.mxu0 0.0
        %1313 = vmatpush1.msra.mxu0 %v1298
        %1314 = vmatprep.subr.mxu0 0.0
        %1315 = vmatpush1.msra.mxu0 %v1297
        %1316 = vmatprep.subr.mxu0 0.0
        %1317 = vmatpush1.msra.mxu0 %v1296
        %1318 = vmatprep.subr.mxu0 0.0
        %1319 = vmatpush1.msra.mxu0 %v1295
        %1320 = vmatprep.subr.mxu0 0.0
        %1321 = vmatpush1.msra.mxu0 %v1294
        %1322 = vmatprep.subr.mxu0 0.0
        %1323 = vmatpush1.msra.mxu0 %v1293
        %1324 = vmatprep.subr.mxu0 0.0
        %1325 = vmatpush1.msra.mxu0 %v1292
        %1326 = vmatprep.subr.mxu0 0.0
        %1327 = vmatpush1.msra.mxu0 %v1291
        %1328 = vmatprep.subr.mxu0 0.0
        %1329 = vmatpush1.msra.mxu0 %v1290
        %1330 = vmatprep.subr.mxu0 0.0
        %1331 = vmatpush1.msra.mxu0 %v1289
        %1332 = vmatprep.subr.mxu0 0.0
        %1333 = vmatpush1.msra.mxu0 %v1288
        %1334 = vmatprep.subr.mxu0 0.0
        %1335 = vmatpush1.msra.mxu0 %v1287
        %1336 = vmatprep.subr.mxu0 0.0
        %1337 = vmatpush2.msra.mxu0 0.0
        %1338 = vmatprep.subr.mxu0 0.0
        %1339 = vmatpush2.msra.mxu0 0.0
        %1340 = vmatprep.subr.mxu0 0.0
        %1341 = vmatpush2.msra.mxu0 0.0
        %1342 = vmatprep.subr.mxu0 0.0
        %1343 = vmatpush2.msra.mxu0 0.0
        %1344 = vmatprep.subr.mxu0 0.0
        %1345 = vmatpush2.msra.mxu0 0.0
        %1346 = vmatprep.subr.mxu0 0.0
        %1347 = vmatpush2.msra.mxu0 0.0
        %1348 = vmatprep.subr.mxu0 0.0
        %1349 = vmatpush2.msra.mxu0 0.0
        %1350 = vmatprep.subr.mxu0 0.0
        %1351 = vmatpush2.msra.mxu0 0.0
        %1352 = vmatprep.subr.mxu0 0.0
        %1353 = vmatpush2.msra.mxu0 0.0
        %1354 = vmatprep.subr.mxu0 0.0
        %1355 = vmatpush2.msra.mxu0 0.0
        %1356 = vmatprep.subr.mxu0 0.0
        %1357 = vmatpush2.msra.mxu0 0.0
        %1358 = vmatprep.subr.mxu0 0.0
        %1359 = vmatpush2.msra.mxu0 0.0
        %1360 = vmatprep.subr.mxu0 0.0
        %1361 = vmatpush2.msra.mxu0 0.0
        %1362 = vmatprep.subr.mxu0 0.0
        %1363 = vmatpush2.msra.mxu0 0.0
        %1364 = vmatprep.subr.mxu0 0.0
        %1365 = vmatpush2.msra.mxu0 0.0
        %1366 = vmatprep.subr.mxu0 0.0
        %1367 = vmatpush2.msra.mxu0 0.0
        %1368 = vmatprep.mubr.f32.mxu0 0.0
        %1369 = vmatmul.mubr.f32.gmra.mxu0 %v1286
        %v1370 = vpop.f32.mrf.mxu0
        %v1371 = vadd.f32 %v1303, %v1370
        %v1372 = vpop.f32.mrf.mxu0
        %1373 = vdwg.mxu0
        %v1374 = vld [vmem:[#allocation15] sm:$0xff]
        %v1375 = vld [vmem:[#allocation15 + $0x8] sm:$0xff]
        %v1376 = vld [vmem:[#allocation15 + $0x10] sm:$0xff]
        %v1377 = vld [vmem:[#allocation15 + $0x18] sm:$0xff]
        %vm1378 = vcmask 64512
        %v1380 = vsel %vm1378, %v1371, 0
        %1382 = vmatprep.subr.mxu0 0.0
        %1383 = vmatpush1.msra.mxu0 0.0
        %1384 = vmatprep.subr.mxu0 0.0
        %1385 = vmatpush1.msra.mxu0 0.0
        %1386 = vmatprep.subr.mxu0 0.0
        %1387 = vmatpush1.msra.mxu0 0.0
        %1388 = vmatprep.subr.mxu0 0.0
        %1389 = vmatpush1.msra.mxu0 0.0
        %1390 = vmatprep.subr.mxu0 0.0
        %1391 = vmatpush1.msra.mxu0 0.0
        %1392 = vmatprep.subr.mxu0 0.0
        %1393 = vmatpush1.msra.mxu0 0.0
        %1394 = vmatprep.subr.mxu0 0.0
        %1395 = vmatpush1.msra.mxu0 0.0
        %1396 = vmatprep.subr.mxu0 0.0
        %1397 = vmatpush1.msra.mxu0 0.0
        %1398 = vmatprep.subr.mxu0 0.0
        %1399 = vmatpush1.msra.mxu0 0.0
        %1400 = vmatprep.subr.mxu0 0.0
        %1401 = vmatpush1.msra.mxu0 0.0
        %1402 = vmatprep.subr.mxu0 0.0
        %1403 = vmatpush1.msra.mxu0 0.0
        %1404 = vmatprep.subr.mxu0 0.0
        %1405 = vmatpush1.msra.mxu0 0.0
        %1406 = vmatprep.subr.mxu0 0.0
        %1407 = vmatpush1.msra.mxu0 0.0
        %1408 = vmatprep.subr.mxu0 0.0
        %1409 = vmatpush1.msra.mxu0 0.0
        %1410 = vmatprep.subr.mxu0 0.0
        %1411 = vmatpush1.msra.mxu0 0.0
        %1412 = vmatprep.subr.mxu0 %v1375
        %1413 = vmatpush1.msra.mxu0 %v1374
        %1414 = vmatprep.subr.mxu0 0.0
        %1415 = vmatpush2.msra.mxu0 0.0
        %1416 = vmatprep.subr.mxu0 0.0
        %1417 = vmatpush2.msra.mxu0 0.0
        %1418 = vmatprep.subr.mxu0 0.0
        %1419 = vmatpush2.msra.mxu0 0.0
        %1420 = vmatprep.subr.mxu0 0.0
        %1421 = vmatpush2.msra.mxu0 0.0
        %1422 = vmatprep.subr.mxu0 0.0
        %1423 = vmatpush2.msra.mxu0 0.0
        %1424 = vmatprep.subr.mxu0 0.0
        %1425 = vmatpush2.msra.mxu0 0.0
        %1426 = vmatprep.subr.mxu0 0.0
        %1427 = vmatpush2.msra.mxu0 0.0
        %1428 = vmatprep.subr.mxu0 0.0
        %1429 = vmatpush2.msra.mxu0 0.0
        %1430 = vmatprep.subr.mxu0 0.0
        %1431 = vmatpush2.msra.mxu0 0.0
        %1432 = vmatprep.subr.mxu0 0.0
        %1433 = vmatpush2.msra.mxu0 0.0
        %1434 = vmatprep.subr.mxu0 0.0
        %1435 = vmatpush2.msra.mxu0 0.0
        %1436 = vmatprep.subr.mxu0 0.0
        %1437 = vmatpush2.msra.mxu0 0.0
        %1438 = vmatprep.subr.mxu0 0.0
        %1439 = vmatpush2.msra.mxu0 0.0
        %1440 = vmatprep.subr.mxu0 0.0
        %1441 = vmatpush2.msra.mxu0 0.0
        %1442 = vmatprep.subr.mxu0 0.0
        %1443 = vmatpush2.msra.mxu0 0.0
        %1444 = vmatprep.subr.mxu0 0.0
        %1445 = vmatpush2.msra.mxu0 0.0
        %1446 = vmatprep.mubr.f32.mxu0 0.0
        %1447 = vmatmul.mubr.f32.gmra.mxu0 %v1380
        %v1448 = vpop.f32.mrf.mxu0
        %v1449 = vadd.f32 0.0, %v1448
        %v1450 = vpop.f32.mrf.mxu0
        %v1451 = vadd.f32 0.0, %v1450
        %1452 = vdwg.mxu0
        %1453 = vmatprep.subr.mxu0 0.0
        %1454 = vmatpush1.msra.mxu0 0.0
        %1455 = vmatprep.subr.mxu0 0.0
        %1456 = vmatpush1.msra.mxu0 0.0
        %1457 = vmatprep.subr.mxu0 0.0
        %1458 = vmatpush1.msra.mxu0 0.0
        %1459 = vmatprep.subr.mxu0 0.0
        %1460 = vmatpush1.msra.mxu0 0.0
        %1461 = vmatprep.subr.mxu0 0.0
        %1462 = vmatpush1.msra.mxu0 0.0
        %1463 = vmatprep.subr.mxu0 0.0
        %1464 = vmatpush1.msra.mxu0 0.0
        %1465 = vmatprep.subr.mxu0 0.0
        %1466 = vmatpush1.msra.mxu0 0.0
        %1467 = vmatprep.subr.mxu0 0.0
        %1468 = vmatpush1.msra.mxu0 0.0
        %1469 = vmatprep.subr.mxu0 0.0
        %1470 = vmatpush1.msra.mxu0 0.0
        %1471 = vmatprep.subr.mxu0 0.0
        %1472 = vmatpush1.msra.mxu0 0.0
        %1473 = vmatprep.subr.mxu0 0.0
        %1474 = vmatpush1.msra.mxu0 0.0
        %1475 = vmatprep.subr.mxu0 0.0
        %1476 = vmatpush1.msra.mxu0 0.0
        %1477 = vmatprep.subr.mxu0 0.0
        %1478 = vmatpush1.msra.mxu0 0.0
        %1479 = vmatprep.subr.mxu0 0.0
        %1480 = vmatpush1.msra.mxu0 0.0
        %1481 = vmatprep.subr.mxu0 0.0
        %1482 = vmatpush1.msra.mxu0 0.0
        %1483 = vmatprep.subr.mxu0 %v1377
        %1484 = vmatpush1.msra.mxu0 %v1376
        %1485 = vmatprep.subr.mxu0 0.0
        %1486 = vmatpush2.msra.mxu0 0.0
        %1487 = vmatprep.subr.mxu0 0.0
        %1488 = vmatpush2.msra.mxu0 0.0
        %1489 = vmatprep.subr.mxu0 0.0
        %1490 = vmatpush2.msra.mxu0 0.0
        %1491 = vmatprep.subr.mxu0 0.0
        %1492 = vmatpush2.msra.mxu0 0.0
        %1493 = vmatprep.subr.mxu0 0.0
        %1494 = vmatpush2.msra.mxu0 0.0
        %1495 = vmatprep.subr.mxu0 0.0
        %1496 = vmatpush2.msra.mxu0 0.0
        %1497 = vmatprep.subr.mxu0 0.0
        %1498 = vmatpush2.msra.mxu0 0.0
        %1499 = vmatprep.subr.mxu0 0.0
        %1500 = vmatpush2.msra.mxu0 0.0
        %1501 = vmatprep.subr.mxu0 0.0
        %1502 = vmatpush2.msra.mxu0 0.0
        %1503 = vmatprep.subr.mxu0 0.0
        %1504 = vmatpush2.msra.mxu0 0.0
        %1505 = vmatprep.subr.mxu0 0.0
        %1506 = vmatpush2.msra.mxu0 0.0
        %1507 = vmatprep.subr.mxu0 0.0
        %1508 = vmatpush2.msra.mxu0 0.0
        %1509 = vmatprep.subr.mxu0 0.0
        %1510 = vmatpush2.msra.mxu0 0.0
        %1511 = vmatprep.subr.mxu0 0.0
        %1512 = vmatpush2.msra.mxu0 0.0
        %1513 = vmatprep.subr.mxu0 0.0
        %1514 = vmatpush2.msra.mxu0 0.0
        %1515 = vmatprep.subr.mxu0 0.0
        %1516 = vmatpush2.msra.mxu0 0.0
        %1517 = vmatprep.mubr.f32.mxu0 0.0
        %1518 = vmatmul.mubr.f32.gmra.mxu0 %v1380
        %v1519 = vpop.f32.mrf.mxu0
        %v1520 = vadd.f32 0.0, %v1519
        %v1521 = vpop.f32.mrf.mxu0
        %v1522 = vadd.f32 0.0, %v1521
        %1523 = vdwg.mxu0
        %v1528 = vcombine.low %v1449, %v1451
        %v1529 = vcombine.low %v1520, %v1522
        %v1531 = vunpack.c.l.s4 1966171168
        %v1532 = vunpack.c.0.s8 %v1531
        %v1533 = vlaneseq
        %v1534 = vshrl.u32 %v1533, 7
        %v1535 = vsub.s32 %v1532, %v1534
        %v1536 = vrot.slane %v1528, %v1535
        %v1538 = vunpack.c.l.s4 1966171168
        %v1539 = vunpack.c.0.s8 %v1538
        %v1540 = vlaneseq
        %v1541 = vshrl.u32 %v1540, 7
        %v1542 = vsub.s32 %v1539, %v1541
        %v1543 = vrot.slane %v1529, %v1542
        %v1544 = vcombine.low %v1536, %v1543
        %v1546 = vunpack.c.l.s4 1966171168
        %v1547 = vunpack.c.0.s8 %v1546
        %v1548 = vlaneseq
        %v1549 = vshrl.u32 %v1548, 7
        %v1550 = vsub.s32 %v1547, %v1549
        %v1551 = vrot.slane %v1544, %v1550
        %v1553 = vlaneseq
        %vm1554 = vcmp.ge.s32.totalorder %v1553, 0
        %vm1555 = vcmp.lt.s32.totalorder %v1553, 512
        %vm1556 = vmand %vm1554, %vm1555
        %1557 = vst.msk [vmem:[%s547] sm:$0xf] %vm1556, %v1551
        %v1558 = vsel %vm1378, %v1371, 0.0
        %1559 = vst [vmem:[%s550] sm:$0x1] %v1558
        %p1560 = scmp.lt.s32.totalorder %s32, 1
        %s1561 = scalar_select %p1560, %s32, 1
        %s1562 = smul.addr %s1561, 4
        %s1563 = scalar_lea.vmem %s11, %s1562
        %p1564 = scmp.lt.s32.totalorder %s32, 1
        %s1565 = scalar_select %p1564, %s32, 1
        %s1566 = scalar_lea.vmem %s12, %s1565
        // Predicated region
        $region93: #{_forward_impl.1} parent=63 // pred_check
          %p1567 = pneg %p291
        $region94: #{_forward_impl.1} parent=63 // pred_check_branch
          %1569 = sbr.rel (%p1567) target = $region96
        $region95: #{_forward_impl.1} parent=63 // pred_region
          _
        $region96: #{_forward_impl.1} parent=63 // pred_fallthru
          _
        // Predicated region
        $region97: #{_forward_impl.1} parent=63 // pred_check
          %p1570 = pneg %p317
        $region98: #{_forward_impl.1} parent=63 // pred_check_branch
          %1572 = sbr.rel (%p1570) target = $region100
        $region99: #{_forward_impl.1} parent=63 // pred_region
          _
        $region100: #{_forward_impl.1} parent=63 // pred_fallthru
          _
      $region64: #{_forward_impl.1} parent=5 // pred_fallthru
        _
      %p1573 = scmp.le.s32.totalorder 2, %s27
      // Predicated region
      $region101: #{_forward_impl.1} parent=5 // pred_check
        %p1574 = pneg %p1573
      $region102: #{_forward_impl.1} parent=5 // pred_check_branch
        %1576 = sbr.rel (%p1574) target = $region104
      $region103: #{_forward_impl.1} parent=5 // pred_region
        %s1577 = ssub.s32 %s27, 2
        // Predicated region
        $region105: #{_forward_impl.1} parent=103 // pred_check
          %p1578 = pneg %p297
        $region106: #{_forward_impl.1} parent=103 // pred_check_branch
          %1580 = sbr.rel (%p1578) target = $region108
        $region107: #{_forward_impl.1} parent=103 // pred_region
          %p1581 = scmp.lt.s32.totalorder %s33, 1
          %s1582 = scalar_select %p1581, %s33, 1
          %s1583 = smul.addr %s1582, 4
          %s1584 = scalar_lea.vmem %s11, %s1583
        $region108: #{_forward_impl.1} parent=103 // pred_fallthru
          _
        // Predicated region
        $region109: #{_forward_impl.1} parent=103 // pred_check
          %p1585 = pneg %p323
        $region110: #{_forward_impl.1} parent=103 // pred_check_branch
          %1587 = sbr.rel (%p1585) target = $region112
        $region111: #{_forward_impl.1} parent=103 // pred_region
          %p1588 = scmp.lt.s32.totalorder %s33, 1
          %s1589 = scalar_select %p1588, %s33, 1
          %s1590 = scalar_lea.vmem %s12, %s1589
        $region112: #{_forward_impl.1} parent=103 // pred_fallthru
          _
      $region104: #{_forward_impl.1} parent=5 // pred_fallthru
        _
    $region6: #{_forward_impl.1} parent=1 // loop_footer
      %s31 = sadd.s32 1, %s27
    $region7: #{_forward_impl.1} parent=1 // loop_footer_branch
      %26 = sbr.rel target = $region3
    $region8: #{_forward_impl.1} parent=1 // loop_exit
      _
    %1591 = vsyncpa [#allocation6], 1
    %s1592 = scalar_lea.sflag [#allocation6], 1
    %1593 = vsyncpa %s1592, 1
    %1594 = vsyncpa [#allocation8], 1
    %s1595 = scalar_lea.sflag [#allocation8], 1
    %1596 = vsyncpa %s1595, 1
    %1597 = vsyncpa [#allocation11], 1
    %1598 = vsyncpa [#allocation14], 1

</llo_original>
